<compile_context>
chip_gen: v6e
topology: v6e:2x2x1
jax: 0.10.0
libtpu: 0.0.40
codegen_flags: <defaults>
</compile_context>

<pallas_src>
import functools

import jax
import jax.numpy as jnp
from jax.experimental import pallas as pl
from jax.experimental.pallas import tpu as pltpu

K = 3  # kernel size


def _snconv2d_kernel(x_ref, w_ref, o_ref, *, H, W, Cin, Cout):
    """One batch element per grid step.

    x_ref: (1, Cin, H, W)            unpadded NCHW input tile (VMEM)
    w_ref: (Cout, K*K*Cin + 1)       spectrally-normalized weight, bias folded
                                     in as the last column (VMEM, grid-invariant)
    o_ref: (1, Cout, H*W)            lane-dense output tile (VMEM)
    """
    x = x_ref[0]  # (Cin, H, W)

    # Reflect padding by 1 on both spatial dims (padding_mode='reflect').
    xh = jnp.concatenate([x[:, 1:2, :], x, x[:, H - 2:H - 1, :]], axis=1)    # (Cin, H+2, W)
    xp = jnp.concatenate([xh[:, :, 1:2], xh, xh[:, :, W - 2:W - 1]], axis=2)  # (Cin, H+2, W+2)

    # im2col: stack the 9 shifted views -> (K*K*Cin, H*W), plus a ones row so
    # the bias column of w_ref performs the bias add inside the same matmul.
    rows = []
    for ky in range(K):
        for kx in range(K):
            rows.append(xp[:, ky:ky + H, kx:kx + W].reshape(Cin, H * W))
    rows.append(jnp.ones((1, H * W), jnp.float32))
    patch = jnp.concatenate(rows, axis=0)  # (K*K*Cin + 1, H*W)

    # Single MXU matmul: (Cout, K*K*Cin+1) x (K*K*Cin+1, H*W) -> (Cout, H*W).
    acc = jnp.dot(w_ref[...], patch, preferred_element_type=jnp.float32)
    o_ref[0] = acc.astype(o_ref.dtype)


def sn_conv2d(x_nchw, weight, bias, u):
    """Forward pass of SNConv2d.

    x_nchw : (N, Cin, H, W)      float32, NCHW (consumed as-is, no transpose)
    weight : (Cout, Cin, K, K)   raw Conv2d weight
    bias   : (Cout,)
    u      : (Cout,)             spectral-norm power-iteration vector
    returns: (out (N, Cout, H, W), u_new (Cout,))
    """
    N, Cin, H, W = x_nchw.shape
    Cout = weight.shape[0]

    # ---- spectral norm (plain JAX glue): one power iteration, dim=0, eps=1e-12 ----
    w_mat = weight.reshape(Cout, Cin * K * K)
    eps = 1e-12
    v = w_mat.T @ u
    v = v / jnp.maximum(jnp.linalg.norm(v), eps)
    u_new = w_mat @ v
    u_new = u_new / jnp.maximum(jnp.linalg.norm(u_new), eps)
    sigma = u_new @ (w_mat @ v)
    w_sn = weight / sigma

    # Reorder weight to the patch stacking order ((ky*K+kx)*Cin + ci) and fold the
    # bias in as an extra column (matched by the ones row appended in the kernel).
    w2 = jnp.transpose(w_sn, (0, 2, 3, 1)).reshape(Cout, K * K * Cin)
    w_aug = jnp.concatenate([w2, bias[:, None]], axis=1).astype(jnp.float32)

    kernel = functools.partial(_snconv2d_kernel, H=H, W=W, Cin=Cin, Cout=Cout)

    out_flat = pl.pallas_call(
        kernel,
        out_shape=jax.ShapeDtypeStruct((N, Cout, H * W), jnp.float32),
        grid_spec=pltpu.PrefetchScalarGridSpec(
            num_scalar_prefetch=0,
            grid=(N,),
            in_specs=[
                pl.BlockSpec((1, Cin, H, W), lambda n: (n, 0, 0, 0)),
                pl.BlockSpec((Cout, K * K * Cin + 1), lambda n: (0, 0)),
            ],
            out_specs=pl.BlockSpec((1, Cout, H * W), lambda n: (n, 0, 0)),
        ),
        compiler_params=pltpu.CompilerParams(
            dimension_semantics=("parallel",)),
    )(x_nchw.astype(jnp.float32), w_aug)

    # (N, Cout, H*W) -> (N, Cout, H, W): pure reshape, free in XLA.
    return out_flat.reshape(N, Cout, H, W), u_new


def _reference(x, weight, bias, u):
    """Pure-JAX reference (spectral_norm + reflect-pad conv) for validation."""
    Cout = weight.shape[0]
    w_mat = weight.reshape(Cout, -1)
    eps = 1e-12
    v = w_mat.T @ u
    v = v / jnp.maximum(jnp.linalg.norm(v), eps)
    u_new = w_mat @ v
    u_new = u_new / jnp.maximum(jnp.linalg.norm(u_new), eps)
    sigma = u_new @ (w_mat @ v)
    w_sn = weight / sigma
    xp = jnp.pad(x, ((0, 0), (0, 0), (1, 1), (1, 1)), mode='reflect')
    y = jax.lax.conv_general_dilated(
        xp, w_sn, window_strides=(1, 1), padding='VALID',
        dimension_numbers=('NCHW', 'OIHW', 'NCHW'))
    return y + bias[None, :, None, None]


if __name__ == "__main__":
    key = jax.random.PRNGKey(0)
    k_x, k_w, k_b, k_u = jax.random.split(key, 4)

    N, Cin, Cout, H, W = 2, 4, 4, 16, 16

    x = jax.random.normal(k_x, (N, Cin, H, W), dtype=jnp.float32)
    # Deterministic parameter init (shapes match nn.Conv2d(Cin, Cout, 3)).
    fan_in = Cin * K * K
    bound = 1.0 / jnp.sqrt(fan_in)
    weight = jax.random.uniform(k_w, (Cout, Cin, K, K),
                                minval=-bound, maxval=bound, dtype=jnp.float32)
    bias = jax.random.uniform(k_b, (Cout,), minval=-bound, maxval=bound,
                              dtype=jnp.float32)
    u0 = jax.random.normal(k_u, (Cout,), dtype=jnp.float32)
    u0 = u0 / jnp.maximum(jnp.linalg.norm(u0), 1e-12)

    out, u_new = sn_conv2d(x, weight, bias, u0)
    jax.block_until_ready(out)
    assert out.shape == (N, Cout, H, W), out.shape
    assert u_new.shape == (Cout,), u_new.shape

    ref = _reference(x, weight, bias, u0)
    err = float(jnp.max(jnp.abs(out - ref)))
    assert err < 1e-3, f"max abs error vs reference: {err}"

    print("KERNEL_OK")
</pallas_src>

<mosaic_0001>
module attributes {stable_mosaic.version = 11 : i64} {
  func.func @_snconv2d_kernel(%arg0: i32, %arg1: memref<1x4x16x16xf32, #tpu.memory_space<vmem>>, %arg2: memref<4x37xf32, #tpu.memory_space<vmem>>, %arg3: memref<1x4x256xf32, #tpu.memory_space<vmem>>) attributes {dimension_semantics = [#tpu.dimension_semantics<parallel>], iteration_bounds = array<i64: 2>, scalar_prefetch = 0 : i64, scratch_operands = 0 : i64, tpu.core_type = #tpu.core_type<tc>, window_params = [{transform_indices = @transform_0, window_bounds = array<i64: 1, 4, 16, 16>}, {pipeline_mode = #tpu.pipeline_mode<synchronous>, transform_indices = @transform_1, window_bounds = array<i64: 4, 37>}, {transform_indices = @transform_2, window_bounds = array<i64: 1, 4, 256>}]} {
    %c0 = arith.constant 0 : index
    %c0_0 = arith.constant 0 : index
    %c0_1 = arith.constant 0 : index
    %c0_2 = arith.constant 0 : index
    %0 = vector.load %arg1[%c0, %c0_0, %c0_1, %c0_2] : memref<1x4x16x16xf32, #tpu.memory_space<vmem>>, vector<1x4x16x16xf32>
    %1 = vector.shape_cast %0 : vector<1x4x16x16xf32> to vector<4x16x16xf32>
    %2 = vector.extract_strided_slice %1 {offsets = [0, 1, 0], sizes = [4, 1, 16], strides = [1, 1, 1]} : vector<4x16x16xf32> to vector<4x1x16xf32>
    %3 = vector.extract_strided_slice %1 {offsets = [0, 14, 0], sizes = [4, 1, 16], strides = [1, 1, 1]} : vector<4x16x16xf32> to vector<4x1x16xf32>
    %4 = tpu.concatenate %2, %1, %3 in 1 : vector<4x1x16xf32>, vector<4x16x16xf32>, vector<4x1x16xf32> -> vector<4x18x16xf32>
    %5 = vector.extract_strided_slice %4 {offsets = [0, 0, 1], sizes = [4, 18, 1], strides = [1, 1, 1]} : vector<4x18x16xf32> to vector<4x18x1xf32>
    %6 = vector.extract_strided_slice %4 {offsets = [0, 0, 14], sizes = [4, 18, 1], strides = [1, 1, 1]} : vector<4x18x16xf32> to vector<4x18x1xf32>
    %7 = tpu.concatenate %5, %4, %6 in 2 : vector<4x18x1xf32>, vector<4x18x16xf32>, vector<4x18x1xf32> -> vector<4x18x18xf32>
    %8 = vector.extract_strided_slice %7 {offsets = [0, 0, 0], sizes = [4, 16, 16], strides = [1, 1, 1]} : vector<4x18x18xf32> to vector<4x16x16xf32>
    %9 = vector.shape_cast %8 : vector<4x16x16xf32> to vector<4x256xf32>
    %10 = vector.extract_strided_slice %7 {offsets = [0, 0, 1], sizes = [4, 16, 16], strides = [1, 1, 1]} : vector<4x18x18xf32> to vector<4x16x16xf32>
    %11 = vector.shape_cast %10 : vector<4x16x16xf32> to vector<4x256xf32>
    %12 = vector.extract_strided_slice %7 {offsets = [0, 0, 2], sizes = [4, 16, 16], strides = [1, 1, 1]} : vector<4x18x18xf32> to vector<4x16x16xf32>
    %13 = vector.shape_cast %12 : vector<4x16x16xf32> to vector<4x256xf32>
    %14 = vector.extract_strided_slice %7 {offsets = [0, 1, 0], sizes = [4, 16, 16], strides = [1, 1, 1]} : vector<4x18x18xf32> to vector<4x16x16xf32>
    %15 = vector.shape_cast %14 : vector<4x16x16xf32> to vector<4x256xf32>
    %16 = vector.extract_strided_slice %7 {offsets = [0, 1, 1], sizes = [4, 16, 16], strides = [1, 1, 1]} : vector<4x18x18xf32> to vector<4x16x16xf32>
    %17 = vector.shape_cast %16 : vector<4x16x16xf32> to vector<4x256xf32>
    %18 = vector.extract_strided_slice %7 {offsets = [0, 1, 2], sizes = [4, 16, 16], strides = [1, 1, 1]} : vector<4x18x18xf32> to vector<4x16x16xf32>
    %19 = vector.shape_cast %18 : vector<4x16x16xf32> to vector<4x256xf32>
    %20 = vector.extract_strided_slice %7 {offsets = [0, 2, 0], sizes = [4, 16, 16], strides = [1, 1, 1]} : vector<4x18x18xf32> to vector<4x16x16xf32>
    %21 = vector.shape_cast %20 : vector<4x16x16xf32> to vector<4x256xf32>
    %22 = vector.extract_strided_slice %7 {offsets = [0, 2, 1], sizes = [4, 16, 16], strides = [1, 1, 1]} : vector<4x18x18xf32> to vector<4x16x16xf32>
    %23 = vector.shape_cast %22 : vector<4x16x16xf32> to vector<4x256xf32>
    %24 = vector.extract_strided_slice %7 {offsets = [0, 2, 2], sizes = [4, 16, 16], strides = [1, 1, 1]} : vector<4x18x18xf32> to vector<4x16x16xf32>
    %25 = vector.shape_cast %24 : vector<4x16x16xf32> to vector<4x256xf32>
    %cst = arith.constant 1.000000e+00 : f32
    %26 = vector.broadcast %cst : f32 to vector<1x256xf32>
    %27 = tpu.concatenate %9, %11, %13, %15, %17, %19, %21, %23, %25, %26 in 0 : vector<4x256xf32>, vector<4x256xf32>, vector<4x256xf32>, vector<4x256xf32>, vector<4x256xf32>, vector<4x256xf32>, vector<4x256xf32>, vector<4x256xf32>, vector<4x256xf32>, vector<1x256xf32> -> vector<37x256xf32>
    %c0_3 = arith.constant 0 : index
    %c0_4 = arith.constant 0 : index
    %28 = vector.load %arg2[%c0_3, %c0_4] : memref<4x37xf32, #tpu.memory_space<vmem>>, vector<4x37xf32>
    %cst_5 = arith.constant dense<0.000000e+00> : vector<4x256xf32>
    %29 = tpu.matmul %28, %27, %cst_5 {dimension_numbers = #tpu.dot_dimension_numbers<[1], [0], [0], [1], [0, 0, 1, 1], [], []>} : vector<4x37xf32>, vector<37x256xf32>, vector<4x256xf32> -> vector<4x256xf32>
    %c0_6 = arith.constant 0 : index
    %c0_7 = arith.constant 0 : index
    %c0_8 = arith.constant 0 : index
    %30 = vector.load %arg3[%c0_6, %c0_7, %c0_8] : memref<1x4x256xf32, #tpu.memory_space<vmem>>, vector<1x4x256xf32>
    %31 = vector.shape_cast %30 : vector<1x4x256xf32> to vector<4x256xf32>
    %32 = vector.shape_cast %29 : vector<4x256xf32> to vector<1x4x256xf32>
    tpu.vector_store %arg3[%c0_6, %c0_7, %c0_8], %32 {strides = array<i32>} : memref<1x4x256xf32, #tpu.memory_space<vmem>>, vector<1x4x256xf32>,
    return
  }
  func.func @transform_0(%arg0: i32) -> (i32, i32, i32, i32) {
    %c0_i32 = arith.constant 0 : i32
    %c0_i32_0 = arith.constant 0 : i32
    %c0_i32_1 = arith.constant 0 : i32
    %c0_i32_2 = arith.constant 0 : i32
    return %arg0, %c0_i32, %c0_i32_0, %c0_i32_1 : i32, i32, i32, i32
  }
  func.func @transform_1(%arg0: i32) -> (i32, i32) {
    %c0_i32 = arith.constant 0 : i32
    %c0_i32_0 = arith.constant 0 : i32
    %c0_i32_1 = arith.constant 0 : i32
    return %c0_i32, %c0_i32_0 : i32, i32
  }
  func.func @transform_2(%arg0: i32) -> (i32, i32, i32) {
    %c0_i32 = arith.constant 0 : i32
    %c0_i32_0 = arith.constant 0 : i32
    %c0_i32_1 = arith.constant 0 : i32
    return %arg0, %c0_i32, %c0_i32_0 : i32, i32, i32
  }
}

</mosaic_0001>

<llo_original>
// kernel: tpu_custom_call.1
$region0: #{tpu_custom_call.1}
  #allocation0 [shape = 'u32[]', space=smem, size = 0x4, offset = 0x4, fixed_abs, tag = 'smem constant byte address 0x4 - core index']
  #allocation1 [shape = 'u32[144,128]{1,0:T(1,128)}', space=vmem, size = 0x12000, scoped, tag = 'internal scratch']
  %s0 = inlined_call_operand.hbm [shape: f32[2,4,16,16], index: 0, kind: input, shape index: {}]
  %s1 = inlined_call_operand.hbm [shape: f32[4,37], index: 1, kind: input, shape index: {}]
  %s2 = inlined_call_operand.hbm [shape: f32[2,4,256], index: 2, kind: output, shape index: {}]
  %s3 = sld [smem:[#allocation0]]
  $region49: #{tpu_custom_call.1} parent=0
    _
  %s5 = ssub.s32 1, %s3
  %s6 = scalar_select 0, %s5, %s3
  $region1: #{tpu_custom_call.1} parent=0
    #allocation2 [shape = 'u8[65536]{0}', space=vmem, size = 0x10000, scoped, tag = 'input window, operand 0']
    #allocation3 [shape = 's32[2]{0}', space=sflag, size = 0x8, scoped, tag = 'scoped memory for tpu_custom_call.1']
    #allocation4 [shape = 's32[2]{0}', space=sflag, size = 0x8, scoped, tag = 'scoped memory for tpu_custom_call.1']
    #allocation5 [shape = 'u8[2048]{0}', space=vmem, size = 0x800, scoped, tag = 'input window, operand 1, single buffered']
    #allocation6 [shape = 's32[1]{0}', space=sflag, size = 0x4, scoped, tag = 'scoped memory for tpu_custom_call.1']
    #allocation7 [shape = 'u8[8192]{0}', space=vmem, size = 0x2000, scoped, tag = 'output window, operand 0']
    %7 = vsyncpa [#allocation3], 0
    %s8 = scalar_lea.sflag [#allocation3], 1
    %9 = vsyncpa %s8, 0
    %10 = vsyncpa [#allocation6], 0
    %11 = vsyncpa [#allocation4], 0
    %s12 = scalar_lea.sflag [#allocation4], 1
    %13 = vsyncpa %s12, 0
    loop: start=0, step=1, limit=4
    $region2: #{tpu_custom_call.1} parent=1 // loop_pre_header
      _
    $region3: #{tpu_custom_call.1} parent=1 // loop_header
      %s15 = sphi 0, %s19
      %p16 = scmp.ge.s32.totalorder %s15, 4
      %s25 = sphi 0, %s27
      %s28 = sphi 0, %s25
      %s29 = sphi 0, %s28
      %s45 = sphi 0, %s29
      %s49 = sphi 0, %s49
      %s51 = sphi 0, %s49
      %s52 = sphi 0, %s51
      %s66 = sphi 0, %s52
      %s72 = sphi 0, %s74
      %s75 = sphi 0, %s72
      %s76 = sphi 0, %s75
      %s92 = sphi 0, %s76
    $region4: #{tpu_custom_call.1} parent=1 // loop_header_branch
      %18 = sbr.rel (%p16) target = $region8
    $region5: #{tpu_custom_call.1} parent=1 // loop_body
      %s20 = ssub.s32 %s15, 1
      %s21 = ssub.s32 %s15, 2
      %s22 = sadd.s32 %s15, 1
      %s23 = ssub.s32 %s15, %s22
      %p24 = scmp.eq.s32.totalorder %s23, 0
      %s26 = sadd.s32 %s25, 1
      %s27 = scalar_select %p24, %s25, %s26
      %p30 = pneg %p24
      %p31 = scmp.eq.s32.totalorder %s15, 1
      %p32 = por %p30, %p31
      %p33 = scmp.ne.s32.totalorder %s25, %s28
      %p34 = scmp.eq.s32.totalorder %s15, 0
      %p35 = por %p33, %p34
      %p36 = scmp.ne.s32.totalorder %s25, %s28
      %p37 = scmp.eq.s32.totalorder %s20, 1
      %p38 = por %p36, %p37
      %p39 = scmp.ne.s32.totalorder %s28, %s29
      %p40 = scmp.eq.s32.totalorder %s20, 0
      %p41 = por %p39, %p40
      %p42 = scmp.ne.s32.totalorder %s28, %s29
      %p43 = scmp.eq.s32.totalorder %s21, 1
      %p44 = por %p42, %p43
      %p46 = scmp.ne.s32.totalorder %s29, %s45
      %p47 = scmp.eq.s32.totalorder %s21, 0
      %p48 = por %p46, %p47
      %s50 = sadd.s32 %s49, 1
      %p53 = scmp.eq.s32.totalorder %s15, 1
      %p54 = scmp.ne.s32.totalorder %s49, %s51
      %p55 = scmp.eq.s32.totalorder %s15, 0
      %p56 = por %p54, %p55
      %p57 = scmp.ne.s32.totalorder %s49, %s51
      %p58 = scmp.eq.s32.totalorder %s20, 1
      %p59 = por %p57, %p58
      %p60 = scmp.ne.s32.totalorder %s51, %s52
      %p61 = scmp.eq.s32.totalorder %s20, 0
      %p62 = por %p60, %p61
      %p63 = scmp.ne.s32.totalorder %s51, %s52
      %p64 = scmp.eq.s32.totalorder %s21, 1
      %p65 = por %p63, %p64
      %p67 = scmp.ne.s32.totalorder %s52, %s66
      %p68 = scmp.eq.s32.totalorder %s21, 0
      %p69 = por %p67, %p68
      %s70 = ssub.s32 %s15, %s22
      %p71 = scmp.eq.s32.totalorder %s70, 0
      %s73 = sadd.s32 %s72, 1
      %s74 = scalar_select %p71, %s72, %s73
      %p77 = pneg %p71
      %p78 = scmp.eq.s32.totalorder %s15, 1
      %p79 = por %p77, %p78
      %p80 = scmp.ne.s32.totalorder %s72, %s75
      %p81 = scmp.eq.s32.totalorder %s15, 0
      %p82 = por %p80, %p81
      %p83 = scmp.ne.s32.totalorder %s72, %s75
      %p84 = scmp.eq.s32.totalorder %s20, 1
      %p85 = por %p83, %p84
      %p86 = scmp.ne.s32.totalorder %s75, %s76
      %p87 = scmp.eq.s32.totalorder %s20, 0
      %p88 = por %p86, %p87
      %p89 = scmp.ne.s32.totalorder %s75, %s76
      %p90 = scmp.eq.s32.totalorder %s21, 1
      %p91 = por %p89, %p90
      %p93 = scmp.ne.s32.totalorder %s76, %s92
      %p94 = scmp.eq.s32.totalorder %s21, 0
      %p95 = por %p93, %p94
      %p96 = scmp.le.s32.totalorder 1, %s15
      %p97 = scmp.lt.s32.totalorder %s15, 3
      %p98 = pnand %p96, %p97
      %p99 = pneg %p98
      // Predicated region
      $region9: #{tpu_custom_call.1} parent=5 // pred_check
        _
      $region10: #{tpu_custom_call.1} parent=5 // pred_check_branch
        %101 = sbr.rel (%p98) target = $region12
      $region11: #{tpu_custom_call.1} parent=5 // pred_region
        %s102 = ssub.s32 %s15, 1
        // Predicated region
        $region13: #{tpu_custom_call.1} parent=11 // pred_check
          %p103 = pneg %p62
        $region14: #{tpu_custom_call.1} parent=11 // pred_check_branch
          %105 = sbr.rel (%p103) target = $region16
        $region15: #{tpu_custom_call.1} parent=11 // pred_region
          %s107 = ssub.s32 64, 64
          %108 = vsyncadd [#allocation6], %s107
          %s110 = sshll.u32 [#allocation5], 4
          %s111 = int_to_ptr.vmem [resolvable:$true] %s110
          %113 = dma.hbm_to_vmem [thread:$0]  %s1, 64, %s111, [#allocation6]
        $region16: #{tpu_custom_call.1} parent=11 // pred_fallthru
          _
      $region12: #{tpu_custom_call.1} parent=5 // pred_fallthru
        _
      %p114 = scmp.lt.s32.totalorder %s15, 2
      // Predicated region
      $region17: #{tpu_custom_call.1} parent=5 // pred_check
        %p115 = pneg %p114
      $region18: #{tpu_custom_call.1} parent=5 // pred_check_branch
        %117 = sbr.rel (%p115) target = $region20
      $region19: #{tpu_custom_call.1} parent=5 // pred_region
        // Predicated region
        $region21: #{tpu_custom_call.1} parent=19 // pred_check
          %p118 = pneg %p35
        $region22: #{tpu_custom_call.1} parent=19 // pred_check_branch
          %120 = sbr.rel (%p118) target = $region24
        $region23: #{tpu_custom_call.1} parent=19 // pred_region
          %s121 = sand.u32 %s25, 1
          %s122 = scalar_lea.sflag [#allocation3], %s121
          %s123 = sand.u32 %s25, 1
          %s124 = smul.addr %s123, 64
          %s125 = scalar_lea.vmem [#allocation2], %s124
          %s127 = ssub.s32 1024, 1024
          %128 = vsyncadd %s122, %s127
          %s129 = smul.addr %s15, 8
          %s130 = smul.addr %s129, 128
          %s131 = scalar_lea.hbm %s0, %s130
          %s132 = sshll.u32 %s125, 4
          %s133 = int_to_ptr.vmem [resolvable:$true] %s132
          %138 = dma.hbm_to_vmem [thread:$0]  %s131, 1024, %s133, %s122, 128, 128, 8
        $region24: #{tpu_custom_call.1} parent=19 // pred_fallthru
          _
      $region20: #{tpu_custom_call.1} parent=5 // pred_fallthru
        _
      %p139 = scmp.le.s32.totalorder 1, %s15
      %p140 = scmp.lt.s32.totalorder %s15, 3
      %p141 = pnand %p139, %p140
      %p142 = pneg %p141
      // Predicated region
      $region25: #{tpu_custom_call.1} parent=5 // pred_check
        _
      $region26: #{tpu_custom_call.1} parent=5 // pred_check_branch
        %144 = sbr.rel (%p141) target = $region28
      $region27: #{tpu_custom_call.1} parent=5 // pred_region
        %s145 = ssub.s32 %s15, 1
        %s146 = sand.u32 %s28, 1
        %s147 = scalar_lea.sflag [#allocation3], %s146
        %s148 = sand.u32 %s28, 1
        %s149 = smul.addr %s148, 64
        %s150 = scalar_lea.vmem [#allocation2], %s149
        // Predicated region
        $region29: #{tpu_custom_call.1} parent=27 // pred_check
          %p151 = pneg %p41
        $region30: #{tpu_custom_call.1} parent=27 // pred_check_branch
          %153 = sbr.rel (%p151) target = $region32
        $region31: #{tpu_custom_call.1} parent=27 // pred_region
          %154 = dma.done %s147, 1024
        $region32: #{tpu_custom_call.1} parent=27 // pred_fallthru
          _
        // Predicated region
        $region33: #{tpu_custom_call.1} parent=27 // pred_check
          %p155 = pneg %p62
        $region34: #{tpu_custom_call.1} parent=27 // pred_check_branch
          %157 = sbr.rel (%p155) target = $region36
        $region35: #{tpu_custom_call.1} parent=27 // pred_region
          %158 = dma.done [#allocation6], 64
        $region36: #{tpu_custom_call.1} parent=27 // pred_fallthru
          _
        %s159 = sand.u32 %s28, 1
        %s160 = scalar_lea.sflag [#allocation3], %s159
        %s161 = sand.u32 %s28, 1
        %s162 = smul.addr %s161, 64
        %s163 = scalar_lea.vmem [#allocation2], %s162
        %p164 = pneg %p41
        %p165 = pneg %p38
        %p166 = pneg %p62
        %p167 = pneg %p59
        %p168 = pneg %p88
        %p169 = pneg %p85
        %s170 = sand.u32 %s75, 1
        %s171 = scalar_lea.sflag [#allocation4], %s170
        %s172 = sand.u32 %s75, 1
        %s173 = smul.addr %s172, 8
        %s174 = scalar_lea.vmem [#allocation7], %s173
        %v175 = vld [vmem:[%s150] sm:$0xff]
        %v176 = vld [vmem:[%s150 + $0x8] sm:$0xff]
        %v177 = vld [vmem:[%s150 + $0x10] sm:$0xff]
        %v178 = vld [vmem:[%s150 + $0x18] sm:$0xff]
        %v179 = vld [vmem:[%s150 + $0x20] sm:$0xff]
        %v180 = vld [vmem:[%s150 + $0x28] sm:$0xff]
        %v181 = vld [vmem:[%s150 + $0x30] sm:$0xff]
        %v182 = vld [vmem:[%s150 + $0x38] sm:$0xff]
        %v187 = vrot.slane %v175, 1
        %v188 = vrot.slane %v177, 1
        %v189 = vrot.slane %v179, 1
        %v190 = vrot.slane %v181, 1
        %vm199 = vcmask 1040384
        %v200 = vrot.slane %v175, 7
        %v201 = vrot.slane %v176, 7
        %v202 = vsel %vm199, %v200, %v201
        %v203 = vrot.slane %v177, 7
        %v204 = vrot.slane %v178, 7
        %v205 = vsel %vm199, %v203, %v204
        %v206 = vrot.slane %v179, 7
        %v207 = vrot.slane %v180, 7
        %v208 = vsel %vm199, %v206, %v207
        %v209 = vrot.slane %v181, 7
        %v210 = vrot.slane %v182, 7
        %v211 = vsel %vm199, %v209, %v210
        %v220 = vrot.slane %v176, 5
        %v221 = vrot.slane %v178, 5
        %v222 = vrot.slane %v180, 5
        %v223 = vrot.slane %v182, 5
        %v228 = vsel %vm199, %v187, %v200
        %v229 = vsel %vm199, %v188, %v203
        %v230 = vsel %vm199, %v189, %v206
        %v231 = vsel %vm199, %v190, %v209
        %v232 = vsel %vm199, %v201, %v220
        %v233 = vsel %vm199, %v204, %v221
        %v234 = vsel %vm199, %v207, %v222
        %v235 = vsel %vm199, %v210, %v223
        %244 = vrot.lane.b32.xlu0 %v228, 127
        %v245 = vpop.permute.xlu0 %244
        %246 = vrot.lane.b32.xlu0 %v202, 127
        %v247 = vpop.permute.xlu0 %246
        %248 = vrot.lane.b32.xlu0 %v232, 127
        %v249 = vpop.permute.xlu0 %248
        %250 = vrot.lane.b32.xlu0 %v229, 127
        %v251 = vpop.permute.xlu0 %250
        %252 = vrot.lane.b32.xlu0 %v205, 127
        %v253 = vpop.permute.xlu0 %252
        %254 = vrot.lane.b32.xlu0 %v233, 127
        %v255 = vpop.permute.xlu0 %254
        %256 = vrot.lane.b32.xlu0 %v230, 127
        %v257 = vpop.permute.xlu0 %256
        %258 = vrot.lane.b32.xlu0 %v208, 127
        %v259 = vpop.permute.xlu0 %258
        %260 = vrot.lane.b32.xlu0 %v234, 127
        %v261 = vpop.permute.xlu0 %260
        %262 = vrot.lane.b32.xlu0 %v231, 127
        %v263 = vpop.permute.xlu0 %262
        %264 = vrot.lane.b32.xlu0 %v211, 127
        %v265 = vpop.permute.xlu0 %264
        %266 = vrot.lane.b32.xlu0 %v235, 127
        %v267 = vpop.permute.xlu0 %266
        %280 = vrot.lane.b32.xlu0 %v228, 1
        %v281 = vpop.permute.xlu0 %280
        %282 = vrot.lane.b32.xlu0 %v202, 1
        %v283 = vpop.permute.xlu0 %282
        %284 = vrot.lane.b32.xlu0 %v232, 1
        %v285 = vpop.permute.xlu0 %284
        %286 = vrot.lane.b32.xlu0 %v229, 1
        %v287 = vpop.permute.xlu0 %286
        %288 = vrot.lane.b32.xlu0 %v205, 1
        %v289 = vpop.permute.xlu0 %288
        %290 = vrot.lane.b32.xlu0 %v233, 1
        %v291 = vpop.permute.xlu0 %290
        %292 = vrot.lane.b32.xlu0 %v230, 1
        %v293 = vpop.permute.xlu0 %292
        %294 = vrot.lane.b32.xlu0 %v208, 1
        %v295 = vpop.permute.xlu0 %294
        %296 = vrot.lane.b32.xlu0 %v234, 1
        %v297 = vpop.permute.xlu0 %296
        %298 = vrot.lane.b32.xlu0 %v231, 1
        %v299 = vpop.permute.xlu0 %298
        %300 = vrot.lane.b32.xlu0 %v211, 1
        %v301 = vpop.permute.xlu0 %300
        %302 = vrot.lane.b32.xlu0 %v235, 1
        %v303 = vpop.permute.xlu0 %302
        %316 = vrot.lane.b32.xlu0 %v228, 3
        %v317 = vpop.permute.xlu0 %316
        %318 = vrot.lane.b32.xlu0 %v202, 3
        %v319 = vpop.permute.xlu0 %318
        %320 = vrot.lane.b32.xlu0 %v232, 3
        %v321 = vpop.permute.xlu0 %320
        %322 = vrot.lane.b32.xlu0 %v229, 3
        %v323 = vpop.permute.xlu0 %322
        %324 = vrot.lane.b32.xlu0 %v205, 3
        %v325 = vpop.permute.xlu0 %324
        %326 = vrot.lane.b32.xlu0 %v233, 3
        %v327 = vpop.permute.xlu0 %326
        %328 = vrot.lane.b32.xlu0 %v230, 3
        %v329 = vpop.permute.xlu0 %328
        %330 = vrot.lane.b32.xlu0 %v208, 3
        %v331 = vpop.permute.xlu0 %330
        %332 = vrot.lane.b32.xlu0 %v234, 3
        %v333 = vpop.permute.xlu0 %332
        %334 = vrot.lane.b32.xlu0 %v231, 3
        %v335 = vpop.permute.xlu0 %334
        %336 = vrot.lane.b32.xlu0 %v211, 3
        %v337 = vpop.permute.xlu0 %336
        %338 = vrot.lane.b32.xlu0 %v235, 3
        %v339 = vpop.permute.xlu0 %338
        %vm352 = vcmask 7168
        %v353 = vsel %vm352, %v245, %v281
        %v354 = vsel %vm352, %v247, %v283
        %v355 = vsel %vm352, %v249, %v285
        %v356 = vsel %vm352, %v251, %v287
        %v357 = vsel %vm352, %v253, %v289
        %v358 = vsel %vm352, %v255, %v291
        %v359 = vsel %vm352, %v257, %v293
        %v360 = vsel %vm352, %v259, %v295
        %v361 = vsel %vm352, %v261, %v297
        %v362 = vsel %vm352, %v263, %v299
        %v363 = vsel %vm352, %v265, %v301
        %v364 = vsel %vm352, %v267, %v303
        %vm365 = vcmask 138240
        %v366 = vsel %vm365, %v353, %v317
        %v367 = vsel %vm365, %v354, %v319
        %v368 = vsel %vm365, %v355, %v321
        %v369 = vsel %vm365, %v356, %v323
        %v370 = vsel %vm365, %v357, %v325
        %v371 = vsel %vm365, %v358, %v327
        %v372 = vsel %vm365, %v359, %v329
        %v373 = vsel %vm365, %v360, %v331
        %v374 = vsel %vm365, %v361, %v333
        %v375 = vsel %vm365, %v362, %v335
        %v376 = vsel %vm365, %v363, %v337
        %v377 = vsel %vm365, %v364, %v339
        %v378 = vcombine.low %v366, %v372
        %v379 = vcombine.high %v366, %v372
        %v381 = vunpack.c.l.s4 1983009808
        %v382 = vunpack.c.0.s8 %v381
        %v383 = vlaneseq
        %v384 = vshrl.u32 %v383, 7
        %v385 = vsub.s32 %v382, %v384
        %v386 = vrot.slane %v378, %v385
        %v388 = vunpack.c.l.s4 1983009808
        %v389 = vunpack.c.0.s8 %v388
        %v390 = vlaneseq
        %v391 = vshrl.u32 %v390, 7
        %v392 = vsub.s32 %v389, %v391
        %v393 = vrot.slane %v379, %v392
        %v394 = vcombine.low %v369, %v375
        %v395 = vcombine.high %v369, %v375
        %v397 = vunpack.c.l.s4 1983009808
        %v398 = vunpack.c.0.s8 %v397
        %v399 = vlaneseq
        %v400 = vshrl.u32 %v399, 7
        %v401 = vsub.s32 %v398, %v400
        %v402 = vrot.slane %v394, %v401
        %v404 = vunpack.c.l.s4 1983009808
        %v405 = vunpack.c.0.s8 %v404
        %v406 = vlaneseq
        %v407 = vshrl.u32 %v406, 7
        %v408 = vsub.s32 %v405, %v407
        %v409 = vrot.slane %v395, %v408
        %v410 = vcombine.low %v386, %v402
        %v411 = vcombine.high %v386, %v402
        %v413 = vunpack.c.l.s4 1934713408
        %v414 = vunpack.c.0.s8 %v413
        %v415 = vlaneseq
        %v416 = vshrl.u32 %v415, 7
        %v417 = vsub.s32 %v414, %v416
        %v418 = vrot.slane %v410, %v417
        %v420 = vunpack.c.l.s4 1934713408
        %v421 = vunpack.c.0.s8 %v420
        %v422 = vlaneseq
        %v423 = vshrl.u32 %v422, 7
        %v424 = vsub.s32 %v421, %v423
        %v425 = vrot.slane %v411, %v424
        %v426 = vcombine.low %v393, %v409
        %v427 = vcombine.high %v393, %v409
        %v429 = vunpack.c.l.s4 1934713408
        %v430 = vunpack.c.0.s8 %v429
        %v431 = vlaneseq
        %v432 = vshrl.u32 %v431, 7
        %v433 = vsub.s32 %v430, %v432
        %v434 = vrot.slane %v426, %v433
        %v436 = vunpack.c.l.s4 1934713408
        %v437 = vunpack.c.0.s8 %v436
        %v438 = vlaneseq
        %v439 = vshrl.u32 %v438, 7
        %v440 = vsub.s32 %v437, %v439
        %v441 = vrot.slane %v427, %v440
        %v442 = vcombine.high %v418, 0.0
        %v443 = vcombine.high %v425, 0.0
        %v444 = vcombine.high %v434, 0.0
        %v445 = vcombine.high %v441, 0.0
        %v446 = vcombine.low %v367, %v373
        %v447 = vcombine.high %v367, %v373
        %v449 = vunpack.c.l.s4 1983009808
        %v450 = vunpack.c.0.s8 %v449
        %v451 = vlaneseq
        %v452 = vshrl.u32 %v451, 7
        %v453 = vsub.s32 %v450, %v452
        %v454 = vrot.slane %v446, %v453
        %v456 = vunpack.c.l.s4 1983009808
        %v457 = vunpack.c.0.s8 %v456
        %v458 = vlaneseq
        %v459 = vshrl.u32 %v458, 7
        %v460 = vsub.s32 %v457, %v459
        %v461 = vrot.slane %v447, %v460
        %v462 = vcombine.low %v370, %v376
        %v463 = vcombine.high %v370, %v376
        %v465 = vunpack.c.l.s4 1983009808
        %v466 = vunpack.c.0.s8 %v465
        %v467 = vlaneseq
        %v468 = vshrl.u32 %v467, 7
        %v469 = vsub.s32 %v466, %v468
        %v470 = vrot.slane %v462, %v469
        %v472 = vunpack.c.l.s4 1983009808
        %v473 = vunpack.c.0.s8 %v472
        %v474 = vlaneseq
        %v475 = vshrl.u32 %v474, 7
        %v476 = vsub.s32 %v473, %v475
        %v477 = vrot.slane %v463, %v476
        %v478 = vcombine.low %v454, %v470
        %v479 = vcombine.high %v454, %v470
        %v481 = vunpack.c.l.s4 1934713408
        %v482 = vunpack.c.0.s8 %v481
        %v483 = vlaneseq
        %v484 = vshrl.u32 %v483, 7
        %v485 = vsub.s32 %v482, %v484
        %v486 = vrot.slane %v478, %v485
        %v488 = vunpack.c.l.s4 1934713408
        %v489 = vunpack.c.0.s8 %v488
        %v490 = vlaneseq
        %v491 = vshrl.u32 %v490, 7
        %v492 = vsub.s32 %v489, %v491
        %v493 = vrot.slane %v479, %v492
        %v494 = vcombine.low %v461, %v477
        %v495 = vcombine.high %v461, %v477
        %v497 = vunpack.c.l.s4 1934713408
        %v498 = vunpack.c.0.s8 %v497
        %v499 = vlaneseq
        %v500 = vshrl.u32 %v499, 7
        %v501 = vsub.s32 %v498, %v500
        %v502 = vrot.slane %v494, %v501
        %v504 = vunpack.c.l.s4 1934713408
        %v505 = vunpack.c.0.s8 %v504
        %v506 = vlaneseq
        %v507 = vshrl.u32 %v506, 7
        %v508 = vsub.s32 %v505, %v507
        %v509 = vrot.slane %v495, %v508
        %v510 = vcombine.high %v486, 0.0
        %v511 = vcombine.high %v493, 0.0
        %v512 = vcombine.high %v502, 0.0
        %v513 = vcombine.high %v509, 0.0
        %515 = vrot.lane.b32.xlu0 %v442, 16
        %v516 = vpop.permute.xlu0 %515
        %519 = vrot.lane.b32.xlu0 %v425, 32
        %v520 = vpop.permute.xlu0 %519
        %523 = vrot.lane.b32.xlu0 %v443, 48
        %v524 = vpop.permute.xlu0 %523
        %527 = vrot.lane.b32.xlu0 %v434, 64
        %v528 = vpop.permute.xlu0 %527
        %531 = vrot.lane.b32.xlu0 %v444, 80
        %v532 = vpop.permute.xlu0 %531
        %535 = vrot.lane.b32.xlu0 %v441, 96
        %v536 = vpop.permute.xlu0 %535
        %539 = vrot.lane.b32.xlu0 %v445, 112
        %v540 = vpop.permute.xlu0 %539
        %543 = vrot.lane.b32.xlu0 %v510, 16
        %v544 = vpop.permute.xlu0 %543
        %547 = vrot.lane.b32.xlu0 %v493, 32
        %v548 = vpop.permute.xlu0 %547
        %551 = vrot.lane.b32.xlu0 %v511, 48
        %v552 = vpop.permute.xlu0 %551
        %555 = vrot.lane.b32.xlu0 %v502, 64
        %v556 = vpop.permute.xlu0 %555
        %559 = vrot.lane.b32.xlu0 %v512, 80
        %v560 = vpop.permute.xlu0 %559
        %563 = vrot.lane.b32.xlu0 %v509, 96
        %v564 = vpop.permute.xlu0 %563
        %567 = vrot.lane.b32.xlu0 %v513, 112
        %v568 = vpop.permute.xlu0 %567
        %vm570 = vcmask 130048
        %v571 = vsel %vm570, %v418, %v516
        %vm572 = vcmask 261120
        %v573 = vsel %vm572, %v571, %v520
        %vm574 = vcmask 392192
        %v575 = vsel %vm574, %v573, %v524
        %vm576 = vcmask 523264
        %v577 = vsel %vm576, %v575, %v528
        %vm578 = vcmask 654336
        %v579 = vsel %vm578, %v577, %v532
        %vm580 = vcmask 785408
        %v581 = vsel %vm580, %v579, %v536
        %vm582 = vcmask 916480
        %v583 = vsel %vm582, %v581, %v540
        %v584 = vsel %vm570, %v486, %v544
        %v585 = vsel %vm572, %v584, %v548
        %v586 = vsel %vm574, %v585, %v552
        %v587 = vsel %vm576, %v586, %v556
        %v588 = vsel %vm578, %v587, %v560
        %v589 = vsel %vm580, %v588, %v564
        %v590 = vsel %vm582, %v589, %v568
        %599 = vrot.lane.b32.xlu0 %v366, 127
        %v600 = vpop.permute.xlu0 %599
        %601 = vrot.lane.b32.xlu0 %v367, 127
        %v602 = vpop.permute.xlu0 %601
        %603 = vrot.lane.b32.xlu0 %v369, 127
        %v604 = vpop.permute.xlu0 %603
        %605 = vrot.lane.b32.xlu0 %v370, 127
        %v606 = vpop.permute.xlu0 %605
        %607 = vrot.lane.b32.xlu0 %v372, 127
        %v608 = vpop.permute.xlu0 %607
        %609 = vrot.lane.b32.xlu0 %v373, 127
        %v610 = vpop.permute.xlu0 %609
        %611 = vrot.lane.b32.xlu0 %v375, 127
        %v612 = vpop.permute.xlu0 %611
        %613 = vrot.lane.b32.xlu0 %v376, 127
        %v614 = vpop.permute.xlu0 %613
        %v623 = vcombine.low %v600, %v608
        %v624 = vcombine.high %v600, %v608
        %v626 = vunpack.c.l.s4 1983009808
        %v627 = vunpack.c.0.s8 %v626
        %v628 = vlaneseq
        %v629 = vshrl.u32 %v628, 7
        %v630 = vsub.s32 %v627, %v629
        %v631 = vrot.slane %v623, %v630
        %v633 = vunpack.c.l.s4 1983009808
        %v634 = vunpack.c.0.s8 %v633
        %v635 = vlaneseq
        %v636 = vshrl.u32 %v635, 7
        %v637 = vsub.s32 %v634, %v636
        %v638 = vrot.slane %v624, %v637
        %v639 = vcombine.low %v604, %v612
        %v640 = vcombine.high %v604, %v612
        %v642 = vunpack.c.l.s4 1983009808
        %v643 = vunpack.c.0.s8 %v642
        %v644 = vlaneseq
        %v645 = vshrl.u32 %v644, 7
        %v646 = vsub.s32 %v643, %v645
        %v647 = vrot.slane %v639, %v646
        %v649 = vunpack.c.l.s4 1983009808
        %v650 = vunpack.c.0.s8 %v649
        %v651 = vlaneseq
        %v652 = vshrl.u32 %v651, 7
        %v653 = vsub.s32 %v650, %v652
        %v654 = vrot.slane %v640, %v653
        %v655 = vcombine.low %v631, %v647
        %v656 = vcombine.high %v631, %v647
        %v658 = vunpack.c.l.s4 1934713408
        %v659 = vunpack.c.0.s8 %v658
        %v660 = vlaneseq
        %v661 = vshrl.u32 %v660, 7
        %v662 = vsub.s32 %v659, %v661
        %v663 = vrot.slane %v655, %v662
        %v665 = vunpack.c.l.s4 1934713408
        %v666 = vunpack.c.0.s8 %v665
        %v667 = vlaneseq
        %v668 = vshrl.u32 %v667, 7
        %v669 = vsub.s32 %v666, %v668
        %v670 = vrot.slane %v656, %v669
        %v671 = vcombine.low %v638, %v654
        %v672 = vcombine.high %v638, %v654
        %v674 = vunpack.c.l.s4 1934713408
        %v675 = vunpack.c.0.s8 %v674
        %v676 = vlaneseq
        %v677 = vshrl.u32 %v676, 7
        %v678 = vsub.s32 %v675, %v677
        %v679 = vrot.slane %v671, %v678
        %v681 = vunpack.c.l.s4 1934713408
        %v682 = vunpack.c.0.s8 %v681
        %v683 = vlaneseq
        %v684 = vshrl.u32 %v683, 7
        %v685 = vsub.s32 %v682, %v684
        %v686 = vrot.slane %v672, %v685
        %v687 = vcombine.high %v663, 0.0
        %v688 = vcombine.high %v670, 0.0
        %v689 = vcombine.high %v679, 0.0
        %v690 = vcombine.high %v686, 0.0
        %v691 = vcombine.low %v602, %v610
        %v692 = vcombine.high %v602, %v610
        %v694 = vunpack.c.l.s4 1983009808
        %v695 = vunpack.c.0.s8 %v694
        %v696 = vlaneseq
        %v697 = vshrl.u32 %v696, 7
        %v698 = vsub.s32 %v695, %v697
        %v699 = vrot.slane %v691, %v698
        %v701 = vunpack.c.l.s4 1983009808
        %v702 = vunpack.c.0.s8 %v701
        %v703 = vlaneseq
        %v704 = vshrl.u32 %v703, 7
        %v705 = vsub.s32 %v702, %v704
        %v706 = vrot.slane %v692, %v705
        %v707 = vcombine.low %v606, %v614
        %v708 = vcombine.high %v606, %v614
        %v710 = vunpack.c.l.s4 1983009808
        %v711 = vunpack.c.0.s8 %v710
        %v712 = vlaneseq
        %v713 = vshrl.u32 %v712, 7
        %v714 = vsub.s32 %v711, %v713
        %v715 = vrot.slane %v707, %v714
        %v717 = vunpack.c.l.s4 1983009808
        %v718 = vunpack.c.0.s8 %v717
        %v719 = vlaneseq
        %v720 = vshrl.u32 %v719, 7
        %v721 = vsub.s32 %v718, %v720
        %v722 = vrot.slane %v708, %v721
        %v723 = vcombine.low %v699, %v715
        %v724 = vcombine.high %v699, %v715
        %v726 = vunpack.c.l.s4 1934713408
        %v727 = vunpack.c.0.s8 %v726
        %v728 = vlaneseq
        %v729 = vshrl.u32 %v728, 7
        %v730 = vsub.s32 %v727, %v729
        %v731 = vrot.slane %v723, %v730
        %v733 = vunpack.c.l.s4 1934713408
        %v734 = vunpack.c.0.s8 %v733
        %v735 = vlaneseq
        %v736 = vshrl.u32 %v735, 7
        %v737 = vsub.s32 %v734, %v736
        %v738 = vrot.slane %v724, %v737
        %v739 = vcombine.low %v706, %v722
        %v740 = vcombine.high %v706, %v722
        %v742 = vunpack.c.l.s4 1934713408
        %v743 = vunpack.c.0.s8 %v742
        %v744 = vlaneseq
        %v745 = vshrl.u32 %v744, 7
        %v746 = vsub.s32 %v743, %v745
        %v747 = vrot.slane %v739, %v746
        %v749 = vunpack.c.l.s4 1934713408
        %v750 = vunpack.c.0.s8 %v749
        %v751 = vlaneseq
        %v752 = vshrl.u32 %v751, 7
        %v753 = vsub.s32 %v750, %v752
        %v754 = vrot.slane %v740, %v753
        %v755 = vcombine.high %v731, 0.0
        %v756 = vcombine.high %v738, 0.0
        %v757 = vcombine.high %v747, 0.0
        %v758 = vcombine.high %v754, 0.0
        %760 = vrot.lane.b32.xlu0 %v687, 16
        %v761 = vpop.permute.xlu0 %760
        %764 = vrot.lane.b32.xlu0 %v670, 32
        %v765 = vpop.permute.xlu0 %764
        %768 = vrot.lane.b32.xlu0 %v688, 48
        %v769 = vpop.permute.xlu0 %768
        %772 = vrot.lane.b32.xlu0 %v679, 64
        %v773 = vpop.permute.xlu0 %772
        %776 = vrot.lane.b32.xlu0 %v689, 80
        %v777 = vpop.permute.xlu0 %776
        %780 = vrot.lane.b32.xlu0 %v686, 96
        %v781 = vpop.permute.xlu0 %780
        %784 = vrot.lane.b32.xlu0 %v690, 112
        %v785 = vpop.permute.xlu0 %784
        %788 = vrot.lane.b32.xlu0 %v755, 16
        %v789 = vpop.permute.xlu0 %788
        %792 = vrot.lane.b32.xlu0 %v738, 32
        %v793 = vpop.permute.xlu0 %792
        %796 = vrot.lane.b32.xlu0 %v756, 48
        %v797 = vpop.permute.xlu0 %796
        %800 = vrot.lane.b32.xlu0 %v747, 64
        %v801 = vpop.permute.xlu0 %800
        %804 = vrot.lane.b32.xlu0 %v757, 80
        %v805 = vpop.permute.xlu0 %804
        %808 = vrot.lane.b32.xlu0 %v754, 96
        %v809 = vpop.permute.xlu0 %808
        %812 = vrot.lane.b32.xlu0 %v758, 112
        %v813 = vpop.permute.xlu0 %812
        %v815 = vsel %vm570, %v663, %v761
        %v816 = vsel %vm572, %v815, %v765
        %v817 = vsel %vm574, %v816, %v769
        %v818 = vsel %vm576, %v817, %v773
        %v819 = vsel %vm578, %v818, %v777
        %v820 = vsel %vm580, %v819, %v781
        %v821 = vsel %vm582, %v820, %v785
        %v822 = vsel %vm570, %v731, %v789
        %v823 = vsel %vm572, %v822, %v793
        %v824 = vsel %vm574, %v823, %v797
        %v825 = vsel %vm576, %v824, %v801
        %v826 = vsel %vm578, %v825, %v805
        %v827 = vsel %vm580, %v826, %v809
        %v828 = vsel %vm582, %v827, %v813
        %829 = vrot.lane.b32.xlu0 %v366, 126
        %v830 = vpop.permute.xlu0 %829
        %831 = vrot.lane.b32.xlu0 %v367, 126
        %v832 = vpop.permute.xlu0 %831
        %833 = vrot.lane.b32.xlu0 %v369, 126
        %v834 = vpop.permute.xlu0 %833
        %835 = vrot.lane.b32.xlu0 %v370, 126
        %v836 = vpop.permute.xlu0 %835
        %837 = vrot.lane.b32.xlu0 %v372, 126
        %v838 = vpop.permute.xlu0 %837
        %839 = vrot.lane.b32.xlu0 %v373, 126
        %v840 = vpop.permute.xlu0 %839
        %841 = vrot.lane.b32.xlu0 %v375, 126
        %v842 = vpop.permute.xlu0 %841
        %843 = vrot.lane.b32.xlu0 %v376, 126
        %v844 = vpop.permute.xlu0 %843
        %v853 = vcombine.low %v830, %v838
        %v854 = vcombine.high %v830, %v838
        %v856 = vunpack.c.l.s4 1983009808
        %v857 = vunpack.c.0.s8 %v856
        %v858 = vlaneseq
        %v859 = vshrl.u32 %v858, 7
        %v860 = vsub.s32 %v857, %v859
        %v861 = vrot.slane %v853, %v860
        %v863 = vunpack.c.l.s4 1983009808
        %v864 = vunpack.c.0.s8 %v863
        %v865 = vlaneseq
        %v866 = vshrl.u32 %v865, 7
        %v867 = vsub.s32 %v864, %v866
        %v868 = vrot.slane %v854, %v867
        %v869 = vcombine.low %v834, %v842
        %v870 = vcombine.high %v834, %v842
        %v872 = vunpack.c.l.s4 1983009808
        %v873 = vunpack.c.0.s8 %v872
        %v874 = vlaneseq
        %v875 = vshrl.u32 %v874, 7
        %v876 = vsub.s32 %v873, %v875
        %v877 = vrot.slane %v869, %v876
        %v879 = vunpack.c.l.s4 1983009808
        %v880 = vunpack.c.0.s8 %v879
        %v881 = vlaneseq
        %v882 = vshrl.u32 %v881, 7
        %v883 = vsub.s32 %v880, %v882
        %v884 = vrot.slane %v870, %v883
        %v885 = vcombine.low %v861, %v877
        %v886 = vcombine.high %v861, %v877
        %v888 = vunpack.c.l.s4 1934713408
        %v889 = vunpack.c.0.s8 %v888
        %v890 = vlaneseq
        %v891 = vshrl.u32 %v890, 7
        %v892 = vsub.s32 %v889, %v891
        %v893 = vrot.slane %v885, %v892
        %v895 = vunpack.c.l.s4 1934713408
        %v896 = vunpack.c.0.s8 %v895
        %v897 = vlaneseq
        %v898 = vshrl.u32 %v897, 7
        %v899 = vsub.s32 %v896, %v898
        %v900 = vrot.slane %v886, %v899
        %v901 = vcombine.low %v868, %v884
        %v902 = vcombine.high %v868, %v884
        %v904 = vunpack.c.l.s4 1934713408
        %v905 = vunpack.c.0.s8 %v904
        %v906 = vlaneseq
        %v907 = vshrl.u32 %v906, 7
        %v908 = vsub.s32 %v905, %v907
        %v909 = vrot.slane %v901, %v908
        %v911 = vunpack.c.l.s4 1934713408
        %v912 = vunpack.c.0.s8 %v911
        %v913 = vlaneseq
        %v914 = vshrl.u32 %v913, 7
        %v915 = vsub.s32 %v912, %v914
        %v916 = vrot.slane %v902, %v915
        %v917 = vcombine.high %v893, 0.0
        %v918 = vcombine.high %v900, 0.0
        %v919 = vcombine.high %v909, 0.0
        %v920 = vcombine.high %v916, 0.0
        %v921 = vcombine.low %v832, %v840
        %v922 = vcombine.high %v832, %v840
        %v924 = vunpack.c.l.s4 1983009808
        %v925 = vunpack.c.0.s8 %v924
        %v926 = vlaneseq
        %v927 = vshrl.u32 %v926, 7
        %v928 = vsub.s32 %v925, %v927
        %v929 = vrot.slane %v921, %v928
        %v931 = vunpack.c.l.s4 1983009808
        %v932 = vunpack.c.0.s8 %v931
        %v933 = vlaneseq
        %v934 = vshrl.u32 %v933, 7
        %v935 = vsub.s32 %v932, %v934
        %v936 = vrot.slane %v922, %v935
        %v937 = vcombine.low %v836, %v844
        %v938 = vcombine.high %v836, %v844
        %v940 = vunpack.c.l.s4 1983009808
        %v941 = vunpack.c.0.s8 %v940
        %v942 = vlaneseq
        %v943 = vshrl.u32 %v942, 7
        %v944 = vsub.s32 %v941, %v943
        %v945 = vrot.slane %v937, %v944
        %v947 = vunpack.c.l.s4 1983009808
        %v948 = vunpack.c.0.s8 %v947
        %v949 = vlaneseq
        %v950 = vshrl.u32 %v949, 7
        %v951 = vsub.s32 %v948, %v950
        %v952 = vrot.slane %v938, %v951
        %v953 = vcombine.low %v929, %v945
        %v954 = vcombine.high %v929, %v945
        %v956 = vunpack.c.l.s4 1934713408
        %v957 = vunpack.c.0.s8 %v956
        %v958 = vlaneseq
        %v959 = vshrl.u32 %v958, 7
        %v960 = vsub.s32 %v957, %v959
        %v961 = vrot.slane %v953, %v960
        %v963 = vunpack.c.l.s4 1934713408
        %v964 = vunpack.c.0.s8 %v963
        %v965 = vlaneseq
        %v966 = vshrl.u32 %v965, 7
        %v967 = vsub.s32 %v964, %v966
        %v968 = vrot.slane %v954, %v967
        %v969 = vcombine.low %v936, %v952
        %v970 = vcombine.high %v936, %v952
        %v972 = vunpack.c.l.s4 1934713408
        %v973 = vunpack.c.0.s8 %v972
        %v974 = vlaneseq
        %v975 = vshrl.u32 %v974, 7
        %v976 = vsub.s32 %v973, %v975
        %v977 = vrot.slane %v969, %v976
        %v979 = vunpack.c.l.s4 1934713408
        %v980 = vunpack.c.0.s8 %v979
        %v981 = vlaneseq
        %v982 = vshrl.u32 %v981, 7
        %v983 = vsub.s32 %v980, %v982
        %v984 = vrot.slane %v970, %v983
        %v985 = vcombine.high %v961, 0.0
        %v986 = vcombine.high %v968, 0.0
        %v987 = vcombine.high %v977, 0.0
        %v988 = vcombine.high %v984, 0.0
        %990 = vrot.lane.b32.xlu0 %v917, 16
        %v991 = vpop.permute.xlu0 %990
        %994 = vrot.lane.b32.xlu0 %v900, 32
        %v995 = vpop.permute.xlu0 %994
        %998 = vrot.lane.b32.xlu0 %v918, 48
        %v999 = vpop.permute.xlu0 %998
        %1002 = vrot.lane.b32.xlu0 %v909, 64
        %v1003 = vpop.permute.xlu0 %1002
        %1006 = vrot.lane.b32.xlu0 %v919, 80
        %v1007 = vpop.permute.xlu0 %1006
        %1010 = vrot.lane.b32.xlu0 %v916, 96
        %v1011 = vpop.permute.xlu0 %1010
        %1014 = vrot.lane.b32.xlu0 %v920, 112
        %v1015 = vpop.permute.xlu0 %1014
        %1018 = vrot.lane.b32.xlu0 %v985, 16
        %v1019 = vpop.permute.xlu0 %1018
        %1022 = vrot.lane.b32.xlu0 %v968, 32
        %v1023 = vpop.permute.xlu0 %1022
        %1026 = vrot.lane.b32.xlu0 %v986, 48
        %v1027 = vpop.permute.xlu0 %1026
        %1030 = vrot.lane.b32.xlu0 %v977, 64
        %v1031 = vpop.permute.xlu0 %1030
        %1034 = vrot.lane.b32.xlu0 %v987, 80
        %v1035 = vpop.permute.xlu0 %1034
        %1038 = vrot.lane.b32.xlu0 %v984, 96
        %v1039 = vpop.permute.xlu0 %1038
        %1042 = vrot.lane.b32.xlu0 %v988, 112
        %v1043 = vpop.permute.xlu0 %1042
        %v1045 = vsel %vm570, %v893, %v991
        %v1046 = vsel %vm572, %v1045, %v995
        %v1047 = vsel %vm574, %v1046, %v999
        %v1048 = vsel %vm576, %v1047, %v1003
        %v1049 = vsel %vm578, %v1048, %v1007
        %v1050 = vsel %vm580, %v1049, %v1011
        %v1051 = vsel %vm582, %v1050, %v1015
        %v1052 = vsel %vm570, %v961, %v1019
        %v1053 = vsel %vm572, %v1052, %v1023
        %v1054 = vsel %vm574, %v1053, %v1027
        %v1055 = vsel %vm576, %v1054, %v1031
        %v1056 = vsel %vm578, %v1055, %v1035
        %v1057 = vsel %vm580, %v1056, %v1039
        %v1058 = vsel %vm582, %v1057, %v1043
        %vm1063 = vcmask 1046528
        %v1064 = vrot.slane %v366, 1
        %v1065 = vrot.slane %v367, 1
        %v1066 = vsel %vm1063, %v1064, %v1065
        %v1067 = vrot.slane %v368, 1
        %v1068 = vsel %vm1063, %v1065, %v1067
        %v1069 = vrot.slane %v369, 1
        %v1070 = vrot.slane %v370, 1
        %v1071 = vsel %vm1063, %v1069, %v1070
        %v1072 = vrot.slane %v371, 1
        %v1073 = vsel %vm1063, %v1070, %v1072
        %v1074 = vrot.slane %v372, 1
        %v1075 = vrot.slane %v373, 1
        %v1076 = vsel %vm1063, %v1074, %v1075
        %v1077 = vrot.slane %v374, 1
        %v1078 = vsel %vm1063, %v1075, %v1077
        %v1079 = vrot.slane %v375, 1
        %v1080 = vrot.slane %v376, 1
        %v1081 = vsel %vm1063, %v1079, %v1080
        %v1082 = vrot.slane %v377, 1
        %v1083 = vsel %vm1063, %v1080, %v1082
        %v1092 = vcombine.low %v1066, %v1076
        %v1093 = vcombine.high %v1066, %v1076
        %v1095 = vunpack.c.l.s4 1983009808
        %v1096 = vunpack.c.0.s8 %v1095
        %v1097 = vlaneseq
        %v1098 = vshrl.u32 %v1097, 7
        %v1099 = vsub.s32 %v1096, %v1098
        %v1100 = vrot.slane %v1092, %v1099
        %v1102 = vunpack.c.l.s4 1983009808
        %v1103 = vunpack.c.0.s8 %v1102
        %v1104 = vlaneseq
        %v1105 = vshrl.u32 %v1104, 7
        %v1106 = vsub.s32 %v1103, %v1105
        %v1107 = vrot.slane %v1093, %v1106
        %v1108 = vcombine.low %v1071, %v1081
        %v1109 = vcombine.high %v1071, %v1081
        %v1111 = vunpack.c.l.s4 1983009808
        %v1112 = vunpack.c.0.s8 %v1111
        %v1113 = vlaneseq
        %v1114 = vshrl.u32 %v1113, 7
        %v1115 = vsub.s32 %v1112, %v1114
        %v1116 = vrot.slane %v1108, %v1115
        %v1118 = vunpack.c.l.s4 1983009808
        %v1119 = vunpack.c.0.s8 %v1118
        %v1120 = vlaneseq
        %v1121 = vshrl.u32 %v1120, 7
        %v1122 = vsub.s32 %v1119, %v1121
        %v1123 = vrot.slane %v1109, %v1122
        %v1124 = vcombine.low %v1100, %v1116
        %v1125 = vcombine.high %v1100, %v1116
        %v1127 = vunpack.c.l.s4 1934713408
        %v1128 = vunpack.c.0.s8 %v1127
        %v1129 = vlaneseq
        %v1130 = vshrl.u32 %v1129, 7
        %v1131 = vsub.s32 %v1128, %v1130
        %v1132 = vrot.slane %v1124, %v1131
        %v1134 = vunpack.c.l.s4 1934713408
        %v1135 = vunpack.c.0.s8 %v1134
        %v1136 = vlaneseq
        %v1137 = vshrl.u32 %v1136, 7
        %v1138 = vsub.s32 %v1135, %v1137
        %v1139 = vrot.slane %v1125, %v1138
        %v1140 = vcombine.low %v1107, %v1123
        %v1141 = vcombine.high %v1107, %v1123
        %v1143 = vunpack.c.l.s4 1934713408
        %v1144 = vunpack.c.0.s8 %v1143
        %v1145 = vlaneseq
        %v1146 = vshrl.u32 %v1145, 7
        %v1147 = vsub.s32 %v1144, %v1146
        %v1148 = vrot.slane %v1140, %v1147
        %v1150 = vunpack.c.l.s4 1934713408
        %v1151 = vunpack.c.0.s8 %v1150
        %v1152 = vlaneseq
        %v1153 = vshrl.u32 %v1152, 7
        %v1154 = vsub.s32 %v1151, %v1153
        %v1155 = vrot.slane %v1141, %v1154
        %v1156 = vcombine.high %v1132, 0.0
        %v1157 = vcombine.high %v1139, 0.0
        %v1158 = vcombine.high %v1148, 0.0
        %v1159 = vcombine.high %v1155, 0.0
        %v1160 = vcombine.low %v1068, %v1078
        %v1161 = vcombine.high %v1068, %v1078
        %v1163 = vunpack.c.l.s4 1983009808
        %v1164 = vunpack.c.0.s8 %v1163
        %v1165 = vlaneseq
        %v1166 = vshrl.u32 %v1165, 7
        %v1167 = vsub.s32 %v1164, %v1166
        %v1168 = vrot.slane %v1160, %v1167
        %v1170 = vunpack.c.l.s4 1983009808
        %v1171 = vunpack.c.0.s8 %v1170
        %v1172 = vlaneseq
        %v1173 = vshrl.u32 %v1172, 7
        %v1174 = vsub.s32 %v1171, %v1173
        %v1175 = vrot.slane %v1161, %v1174
        %v1176 = vcombine.low %v1073, %v1083
        %v1177 = vcombine.high %v1073, %v1083
        %v1179 = vunpack.c.l.s4 1983009808
        %v1180 = vunpack.c.0.s8 %v1179
        %v1181 = vlaneseq
        %v1182 = vshrl.u32 %v1181, 7
        %v1183 = vsub.s32 %v1180, %v1182
        %v1184 = vrot.slane %v1176, %v1183
        %v1186 = vunpack.c.l.s4 1983009808
        %v1187 = vunpack.c.0.s8 %v1186
        %v1188 = vlaneseq
        %v1189 = vshrl.u32 %v1188, 7
        %v1190 = vsub.s32 %v1187, %v1189
        %v1191 = vrot.slane %v1177, %v1190
        %v1192 = vcombine.low %v1168, %v1184
        %v1193 = vcombine.high %v1168, %v1184
        %v1195 = vunpack.c.l.s4 1934713408
        %v1196 = vunpack.c.0.s8 %v1195
        %v1197 = vlaneseq
        %v1198 = vshrl.u32 %v1197, 7
        %v1199 = vsub.s32 %v1196, %v1198
        %v1200 = vrot.slane %v1192, %v1199
        %v1202 = vunpack.c.l.s4 1934713408
        %v1203 = vunpack.c.0.s8 %v1202
        %v1204 = vlaneseq
        %v1205 = vshrl.u32 %v1204, 7
        %v1206 = vsub.s32 %v1203, %v1205
        %v1207 = vrot.slane %v1193, %v1206
        %v1208 = vcombine.low %v1175, %v1191
        %v1209 = vcombine.high %v1175, %v1191
        %v1211 = vunpack.c.l.s4 1934713408
        %v1212 = vunpack.c.0.s8 %v1211
        %v1213 = vlaneseq
        %v1214 = vshrl.u32 %v1213, 7
        %v1215 = vsub.s32 %v1212, %v1214
        %v1216 = vrot.slane %v1208, %v1215
        %v1218 = vunpack.c.l.s4 1934713408
        %v1219 = vunpack.c.0.s8 %v1218
        %v1220 = vlaneseq
        %v1221 = vshrl.u32 %v1220, 7
        %v1222 = vsub.s32 %v1219, %v1221
        %v1223 = vrot.slane %v1209, %v1222
        %v1224 = vcombine.high %v1200, 0.0
        %v1225 = vcombine.high %v1207, 0.0
        %v1226 = vcombine.high %v1216, 0.0
        %v1227 = vcombine.high %v1223, 0.0
        %1229 = vrot.lane.b32.xlu0 %v1156, 16
        %v1230 = vpop.permute.xlu0 %1229
        %1233 = vrot.lane.b32.xlu0 %v1139, 32
        %v1234 = vpop.permute.xlu0 %1233
        %1237 = vrot.lane.b32.xlu0 %v1157, 48
        %v1238 = vpop.permute.xlu0 %1237
        %1241 = vrot.lane.b32.xlu0 %v1148, 64
        %v1242 = vpop.permute.xlu0 %1241
        %1245 = vrot.lane.b32.xlu0 %v1158, 80
        %v1246 = vpop.permute.xlu0 %1245
        %1249 = vrot.lane.b32.xlu0 %v1155, 96
        %v1250 = vpop.permute.xlu0 %1249
        %1253 = vrot.lane.b32.xlu0 %v1159, 112
        %v1254 = vpop.permute.xlu0 %1253
        %1257 = vrot.lane.b32.xlu0 %v1224, 16
        %v1258 = vpop.permute.xlu0 %1257
        %1261 = vrot.lane.b32.xlu0 %v1207, 32
        %v1262 = vpop.permute.xlu0 %1261
        %1265 = vrot.lane.b32.xlu0 %v1225, 48
        %v1266 = vpop.permute.xlu0 %1265
        %1269 = vrot.lane.b32.xlu0 %v1216, 64
        %v1270 = vpop.permute.xlu0 %1269
        %1273 = vrot.lane.b32.xlu0 %v1226, 80
        %v1274 = vpop.permute.xlu0 %1273
        %1277 = vrot.lane.b32.xlu0 %v1223, 96
        %v1278 = vpop.permute.xlu0 %1277
        %1281 = vrot.lane.b32.xlu0 %v1227, 112
        %v1282 = vpop.permute.xlu0 %1281
        %v1284 = vsel %vm570, %v1132, %v1230
        %v1285 = vsel %vm572, %v1284, %v1234
        %v1286 = vsel %vm574, %v1285, %v1238
        %v1287 = vsel %vm576, %v1286, %v1242
        %v1288 = vsel %vm578, %v1287, %v1246
        %v1289 = vsel %vm580, %v1288, %v1250
        %v1290 = vsel %vm582, %v1289, %v1254
        %v1291 = vsel %vm570, %v1200, %v1258
        %v1292 = vsel %vm572, %v1291, %v1262
        %v1293 = vsel %vm574, %v1292, %v1266
        %v1294 = vsel %vm576, %v1293, %v1270
        %v1295 = vsel %vm578, %v1294, %v1274
        %v1296 = vsel %vm580, %v1295, %v1278
        %v1297 = vsel %vm582, %v1296, %v1282
        %1298 = vrot.lane.b32.xlu0 %v1066, 127
        %v1299 = vpop.permute.xlu0 %1298
        %1300 = vrot.lane.b32.xlu0 %v1068, 127
        %v1301 = vpop.permute.xlu0 %1300
        %1302 = vrot.lane.b32.xlu0 %v1071, 127
        %v1303 = vpop.permute.xlu0 %1302
        %1304 = vrot.lane.b32.xlu0 %v1073, 127
        %v1305 = vpop.permute.xlu0 %1304
        %1306 = vrot.lane.b32.xlu0 %v1076, 127
        %v1307 = vpop.permute.xlu0 %1306
        %1308 = vrot.lane.b32.xlu0 %v1078, 127
        %v1309 = vpop.permute.xlu0 %1308
        %1310 = vrot.lane.b32.xlu0 %v1081, 127
        %v1311 = vpop.permute.xlu0 %1310
        %1312 = vrot.lane.b32.xlu0 %v1083, 127
        %v1313 = vpop.permute.xlu0 %1312
        %v1322 = vcombine.low %v1299, %v1307
        %v1323 = vcombine.high %v1299, %v1307
        %v1325 = vunpack.c.l.s4 1983009808
        %v1326 = vunpack.c.0.s8 %v1325
        %v1327 = vlaneseq
        %v1328 = vshrl.u32 %v1327, 7
        %v1329 = vsub.s32 %v1326, %v1328
        %v1330 = vrot.slane %v1322, %v1329
        %v1332 = vunpack.c.l.s4 1983009808
        %v1333 = vunpack.c.0.s8 %v1332
        %v1334 = vlaneseq
        %v1335 = vshrl.u32 %v1334, 7
        %v1336 = vsub.s32 %v1333, %v1335
        %v1337 = vrot.slane %v1323, %v1336
        %v1338 = vcombine.low %v1303, %v1311
        %v1339 = vcombine.high %v1303, %v1311
        %v1341 = vunpack.c.l.s4 1983009808
        %v1342 = vunpack.c.0.s8 %v1341
        %v1343 = vlaneseq
        %v1344 = vshrl.u32 %v1343, 7
        %v1345 = vsub.s32 %v1342, %v1344
        %v1346 = vrot.slane %v1338, %v1345
        %v1348 = vunpack.c.l.s4 1983009808
        %v1349 = vunpack.c.0.s8 %v1348
        %v1350 = vlaneseq
        %v1351 = vshrl.u32 %v1350, 7
        %v1352 = vsub.s32 %v1349, %v1351
        %v1353 = vrot.slane %v1339, %v1352
        %v1354 = vcombine.low %v1330, %v1346
        %v1355 = vcombine.high %v1330, %v1346
        %v1357 = vunpack.c.l.s4 1934713408
        %v1358 = vunpack.c.0.s8 %v1357
        %v1359 = vlaneseq
        %v1360 = vshrl.u32 %v1359, 7
        %v1361 = vsub.s32 %v1358, %v1360
        %v1362 = vrot.slane %v1354, %v1361
        %v1364 = vunpack.c.l.s4 1934713408
        %v1365 = vunpack.c.0.s8 %v1364
        %v1366 = vlaneseq
        %v1367 = vshrl.u32 %v1366, 7
        %v1368 = vsub.s32 %v1365, %v1367
        %v1369 = vrot.slane %v1355, %v1368
        %v1370 = vcombine.low %v1337, %v1353
        %v1371 = vcombine.high %v1337, %v1353
        %v1373 = vunpack.c.l.s4 1934713408
        %v1374 = vunpack.c.0.s8 %v1373
        %v1375 = vlaneseq
        %v1376 = vshrl.u32 %v1375, 7
        %v1377 = vsub.s32 %v1374, %v1376
        %v1378 = vrot.slane %v1370, %v1377
        %v1380 = vunpack.c.l.s4 1934713408
        %v1381 = vunpack.c.0.s8 %v1380
        %v1382 = vlaneseq
        %v1383 = vshrl.u32 %v1382, 7
        %v1384 = vsub.s32 %v1381, %v1383
        %v1385 = vrot.slane %v1371, %v1384
        %v1386 = vcombine.high %v1362, 0.0
        %v1387 = vcombine.high %v1369, 0.0
        %v1388 = vcombine.high %v1378, 0.0
        %v1389 = vcombine.high %v1385, 0.0
        %v1390 = vcombine.low %v1301, %v1309
        %v1391 = vcombine.high %v1301, %v1309
        %v1393 = vunpack.c.l.s4 1983009808
        %v1394 = vunpack.c.0.s8 %v1393
        %v1395 = vlaneseq
        %v1396 = vshrl.u32 %v1395, 7
        %v1397 = vsub.s32 %v1394, %v1396
        %v1398 = vrot.slane %v1390, %v1397
        %v1400 = vunpack.c.l.s4 1983009808
        %v1401 = vunpack.c.0.s8 %v1400
        %v1402 = vlaneseq
        %v1403 = vshrl.u32 %v1402, 7
        %v1404 = vsub.s32 %v1401, %v1403
        %v1405 = vrot.slane %v1391, %v1404
        %v1406 = vcombine.low %v1305, %v1313
        %v1407 = vcombine.high %v1305, %v1313
        %v1409 = vunpack.c.l.s4 1983009808
        %v1410 = vunpack.c.0.s8 %v1409
        %v1411 = vlaneseq
        %v1412 = vshrl.u32 %v1411, 7
        %v1413 = vsub.s32 %v1410, %v1412
        %v1414 = vrot.slane %v1406, %v1413
        %v1416 = vunpack.c.l.s4 1983009808
        %v1417 = vunpack.c.0.s8 %v1416
        %v1418 = vlaneseq
        %v1419 = vshrl.u32 %v1418, 7
        %v1420 = vsub.s32 %v1417, %v1419
        %v1421 = vrot.slane %v1407, %v1420
        %v1422 = vcombine.low %v1398, %v1414
        %v1423 = vcombine.high %v1398, %v1414
        %v1425 = vunpack.c.l.s4 1934713408
        %v1426 = vunpack.c.0.s8 %v1425
        %v1427 = vlaneseq
        %v1428 = vshrl.u32 %v1427, 7
        %v1429 = vsub.s32 %v1426, %v1428
        %v1430 = vrot.slane %v1422, %v1429
        %v1432 = vunpack.c.l.s4 1934713408
        %v1433 = vunpack.c.0.s8 %v1432
        %v1434 = vlaneseq
        %v1435 = vshrl.u32 %v1434, 7
        %v1436 = vsub.s32 %v1433, %v1435
        %v1437 = vrot.slane %v1423, %v1436
        %v1438 = vcombine.low %v1405, %v1421
        %v1439 = vcombine.high %v1405, %v1421
        %v1441 = vunpack.c.l.s4 1934713408
        %v1442 = vunpack.c.0.s8 %v1441
        %v1443 = vlaneseq
        %v1444 = vshrl.u32 %v1443, 7
        %v1445 = vsub.s32 %v1442, %v1444
        %v1446 = vrot.slane %v1438, %v1445
        %v1448 = vunpack.c.l.s4 1934713408
        %v1449 = vunpack.c.0.s8 %v1448
        %v1450 = vlaneseq
        %v1451 = vshrl.u32 %v1450, 7
        %v1452 = vsub.s32 %v1449, %v1451
        %v1453 = vrot.slane %v1439, %v1452
        %v1454 = vcombine.high %v1430, 0.0
        %v1455 = vcombine.high %v1437, 0.0
        %v1456 = vcombine.high %v1446, 0.0
        %v1457 = vcombine.high %v1453, 0.0
        %1459 = vrot.lane.b32.xlu0 %v1386, 16
        %v1460 = vpop.permute.xlu0 %1459
        %1463 = vrot.lane.b32.xlu0 %v1369, 32
        %v1464 = vpop.permute.xlu0 %1463
        %1467 = vrot.lane.b32.xlu0 %v1387, 48
        %v1468 = vpop.permute.xlu0 %1467
        %1471 = vrot.lane.b32.xlu0 %v1378, 64
        %v1472 = vpop.permute.xlu0 %1471
        %1475 = vrot.lane.b32.xlu0 %v1388, 80
        %v1476 = vpop.permute.xlu0 %1475
        %1479 = vrot.lane.b32.xlu0 %v1385, 96
        %v1480 = vpop.permute.xlu0 %1479
        %1483 = vrot.lane.b32.xlu0 %v1389, 112
        %v1484 = vpop.permute.xlu0 %1483
        %1487 = vrot.lane.b32.xlu0 %v1454, 16
        %v1488 = vpop.permute.xlu0 %1487
        %1491 = vrot.lane.b32.xlu0 %v1437, 32
        %v1492 = vpop.permute.xlu0 %1491
        %1495 = vrot.lane.b32.xlu0 %v1455, 48
        %v1496 = vpop.permute.xlu0 %1495
        %1499 = vrot.lane.b32.xlu0 %v1446, 64
        %v1500 = vpop.permute.xlu0 %1499
        %1503 = vrot.lane.b32.xlu0 %v1456, 80
        %v1504 = vpop.permute.xlu0 %1503
        %1507 = vrot.lane.b32.xlu0 %v1453, 96
        %v1508 = vpop.permute.xlu0 %1507
        %1511 = vrot.lane.b32.xlu0 %v1457, 112
        %v1512 = vpop.permute.xlu0 %1511
        %v1514 = vsel %vm570, %v1362, %v1460
        %v1515 = vsel %vm572, %v1514, %v1464
        %v1516 = vsel %vm574, %v1515, %v1468
        %v1517 = vsel %vm576, %v1516, %v1472
        %v1518 = vsel %vm578, %v1517, %v1476
        %v1519 = vsel %vm580, %v1518, %v1480
        %v1520 = vsel %vm582, %v1519, %v1484
        %v1521 = vsel %vm570, %v1430, %v1488
        %v1522 = vsel %vm572, %v1521, %v1492
        %v1523 = vsel %vm574, %v1522, %v1496
        %v1524 = vsel %vm576, %v1523, %v1500
        %v1525 = vsel %vm578, %v1524, %v1504
        %v1526 = vsel %vm580, %v1525, %v1508
        %v1527 = vsel %vm582, %v1526, %v1512
        %1528 = vrot.lane.b32.xlu0 %v1066, 126
        %v1529 = vpop.permute.xlu0 %1528
        %1530 = vrot.lane.b32.xlu0 %v1068, 126
        %v1531 = vpop.permute.xlu0 %1530
        %1532 = vrot.lane.b32.xlu0 %v1071, 126
        %v1533 = vpop.permute.xlu0 %1532
        %1534 = vrot.lane.b32.xlu0 %v1073, 126
        %v1535 = vpop.permute.xlu0 %1534
        %1536 = vrot.lane.b32.xlu0 %v1076, 126
        %v1537 = vpop.permute.xlu0 %1536
        %1538 = vrot.lane.b32.xlu0 %v1078, 126
        %v1539 = vpop.permute.xlu0 %1538
        %1540 = vrot.lane.b32.xlu0 %v1081, 126
        %v1541 = vpop.permute.xlu0 %1540
        %1542 = vrot.lane.b32.xlu0 %v1083, 126
        %v1543 = vpop.permute.xlu0 %1542
        %v1552 = vcombine.low %v1529, %v1537
        %v1553 = vcombine.high %v1529, %v1537
        %v1555 = vunpack.c.l.s4 1983009808
        %v1556 = vunpack.c.0.s8 %v1555
        %v1557 = vlaneseq
        %v1558 = vshrl.u32 %v1557, 7
        %v1559 = vsub.s32 %v1556, %v1558
        %v1560 = vrot.slane %v1552, %v1559
        %v1562 = vunpack.c.l.s4 1983009808
        %v1563 = vunpack.c.0.s8 %v1562
        %v1564 = vlaneseq
        %v1565 = vshrl.u32 %v1564, 7
        %v1566 = vsub.s32 %v1563, %v1565
        %v1567 = vrot.slane %v1553, %v1566
        %v1568 = vcombine.low %v1533, %v1541
        %v1569 = vcombine.high %v1533, %v1541
        %v1571 = vunpack.c.l.s4 1983009808
        %v1572 = vunpack.c.0.s8 %v1571
        %v1573 = vlaneseq
        %v1574 = vshrl.u32 %v1573, 7
        %v1575 = vsub.s32 %v1572, %v1574
        %v1576 = vrot.slane %v1568, %v1575
        %v1578 = vunpack.c.l.s4 1983009808
        %v1579 = vunpack.c.0.s8 %v1578
        %v1580 = vlaneseq
        %v1581 = vshrl.u32 %v1580, 7
        %v1582 = vsub.s32 %v1579, %v1581
        %v1583 = vrot.slane %v1569, %v1582
        %v1584 = vcombine.low %v1560, %v1576
        %v1585 = vcombine.high %v1560, %v1576
        %v1587 = vunpack.c.l.s4 1934713408
        %v1588 = vunpack.c.0.s8 %v1587
        %v1589 = vlaneseq
        %v1590 = vshrl.u32 %v1589, 7
        %v1591 = vsub.s32 %v1588, %v1590
        %v1592 = vrot.slane %v1584, %v1591
        %v1594 = vunpack.c.l.s4 1934713408
        %v1595 = vunpack.c.0.s8 %v1594
        %v1596 = vlaneseq
        %v1597 = vshrl.u32 %v1596, 7
        %v1598 = vsub.s32 %v1595, %v1597
        %v1599 = vrot.slane %v1585, %v1598
        %v1600 = vcombine.low %v1567, %v1583
        %v1601 = vcombine.high %v1567, %v1583
        %v1603 = vunpack.c.l.s4 1934713408
        %v1604 = vunpack.c.0.s8 %v1603
        %v1605 = vlaneseq
        %v1606 = vshrl.u32 %v1605, 7
        %v1607 = vsub.s32 %v1604, %v1606
        %v1608 = vrot.slane %v1600, %v1607
        %v1610 = vunpack.c.l.s4 1934713408
        %v1611 = vunpack.c.0.s8 %v1610
        %v1612 = vlaneseq
        %v1613 = vshrl.u32 %v1612, 7
        %v1614 = vsub.s32 %v1611, %v1613
        %v1615 = vrot.slane %v1601, %v1614
        %v1616 = vcombine.high %v1592, 0.0
        %v1617 = vcombine.high %v1599, 0.0
        %v1618 = vcombine.high %v1608, 0.0
        %v1619 = vcombine.high %v1615, 0.0
        %v1620 = vcombine.low %v1531, %v1539
        %v1621 = vcombine.high %v1531, %v1539
        %v1623 = vunpack.c.l.s4 1983009808
        %v1624 = vunpack.c.0.s8 %v1623
        %v1625 = vlaneseq
        %v1626 = vshrl.u32 %v1625, 7
        %v1627 = vsub.s32 %v1624, %v1626
        %v1628 = vrot.slane %v1620, %v1627
        %v1630 = vunpack.c.l.s4 1983009808
        %v1631 = vunpack.c.0.s8 %v1630
        %v1632 = vlaneseq
        %v1633 = vshrl.u32 %v1632, 7
        %v1634 = vsub.s32 %v1631, %v1633
        %v1635 = vrot.slane %v1621, %v1634
        %v1636 = vcombine.low %v1535, %v1543
        %v1637 = vcombine.high %v1535, %v1543
        %v1639 = vunpack.c.l.s4 1983009808
        %v1640 = vunpack.c.0.s8 %v1639
        %v1641 = vlaneseq
        %v1642 = vshrl.u32 %v1641, 7
        %v1643 = vsub.s32 %v1640, %v1642
        %v1644 = vrot.slane %v1636, %v1643
        %v1646 = vunpack.c.l.s4 1983009808
        %v1647 = vunpack.c.0.s8 %v1646
        %v1648 = vlaneseq
        %v1649 = vshrl.u32 %v1648, 7
        %v1650 = vsub.s32 %v1647, %v1649
        %v1651 = vrot.slane %v1637, %v1650
        %v1652 = vcombine.low %v1628, %v1644
        %v1653 = vcombine.high %v1628, %v1644
        %v1655 = vunpack.c.l.s4 1934713408
        %v1656 = vunpack.c.0.s8 %v1655
        %v1657 = vlaneseq
        %v1658 = vshrl.u32 %v1657, 7
        %v1659 = vsub.s32 %v1656, %v1658
        %v1660 = vrot.slane %v1652, %v1659
        %v1662 = vunpack.c.l.s4 1934713408
        %v1663 = vunpack.c.0.s8 %v1662
        %v1664 = vlaneseq
        %v1665 = vshrl.u32 %v1664, 7
        %v1666 = vsub.s32 %v1663, %v1665
        %v1667 = vrot.slane %v1653, %v1666
        %v1668 = vcombine.low %v1635, %v1651
        %v1669 = vcombine.high %v1635, %v1651
        %v1671 = vunpack.c.l.s4 1934713408
        %v1672 = vunpack.c.0.s8 %v1671
        %v1673 = vlaneseq
        %v1674 = vshrl.u32 %v1673, 7
        %v1675 = vsub.s32 %v1672, %v1674
        %v1676 = vrot.slane %v1668, %v1675
        %v1678 = vunpack.c.l.s4 1934713408
        %v1679 = vunpack.c.0.s8 %v1678
        %v1680 = vlaneseq
        %v1681 = vshrl.u32 %v1680, 7
        %v1682 = vsub.s32 %v1679, %v1681
        %v1683 = vrot.slane %v1669, %v1682
        %v1684 = vcombine.high %v1660, 0.0
        %v1685 = vcombine.high %v1667, 0.0
        %v1686 = vcombine.high %v1676, 0.0
        %v1687 = vcombine.high %v1683, 0.0
        %1689 = vrot.lane.b32.xlu0 %v1616, 16
        %v1690 = vpop.permute.xlu0 %1689
        %1693 = vrot.lane.b32.xlu0 %v1599, 32
        %v1694 = vpop.permute.xlu0 %1693
        %1697 = vrot.lane.b32.xlu0 %v1617, 48
        %v1698 = vpop.permute.xlu0 %1697
        %1701 = vrot.lane.b32.xlu0 %v1608, 64
        %v1702 = vpop.permute.xlu0 %1701
        %1705 = vrot.lane.b32.xlu0 %v1618, 80
        %v1706 = vpop.permute.xlu0 %1705
        %1709 = vrot.lane.b32.xlu0 %v1615, 96
        %v1710 = vpop.permute.xlu0 %1709
        %1713 = vrot.lane.b32.xlu0 %v1619, 112
        %v1714 = vpop.permute.xlu0 %1713
        %1717 = vrot.lane.b32.xlu0 %v1684, 16
        %v1718 = vpop.permute.xlu0 %1717
        %1721 = vrot.lane.b32.xlu0 %v1667, 32
        %v1722 = vpop.permute.xlu0 %1721
        %1725 = vrot.lane.b32.xlu0 %v1685, 48
        %v1726 = vpop.permute.xlu0 %1725
        %1729 = vrot.lane.b32.xlu0 %v1676, 64
        %v1730 = vpop.permute.xlu0 %1729
        %1733 = vrot.lane.b32.xlu0 %v1686, 80
        %v1734 = vpop.permute.xlu0 %1733
        %1737 = vrot.lane.b32.xlu0 %v1683, 96
        %v1738 = vpop.permute.xlu0 %1737
        %1741 = vrot.lane.b32.xlu0 %v1687, 112
        %v1742 = vpop.permute.xlu0 %1741
        %v1744 = vsel %vm570, %v1592, %v1690
        %v1745 = vsel %vm572, %v1744, %v1694
        %v1746 = vsel %vm574, %v1745, %v1698
        %v1747 = vsel %vm576, %v1746, %v1702
        %v1748 = vsel %vm578, %v1747, %v1706
        %v1749 = vsel %vm580, %v1748, %v1710
        %v1750 = vsel %vm582, %v1749, %v1714
        %v1751 = vsel %vm570, %v1660, %v1718
        %v1752 = vsel %vm572, %v1751, %v1722
        %v1753 = vsel %vm574, %v1752, %v1726
        %v1754 = vsel %vm576, %v1753, %v1730
        %v1755 = vsel %vm578, %v1754, %v1734
        %v1756 = vsel %vm580, %v1755, %v1738
        %v1757 = vsel %vm582, %v1756, %v1742
        %vm1758 = vcmask 1045504
        %v1759 = vrot.slane %v366, 2
        %v1760 = vrot.slane %v367, 2
        %v1761 = vsel %vm1758, %v1759, %v1760
        %v1762 = vrot.slane %v368, 2
        %v1763 = vsel %vm1758, %v1760, %v1762
        %v1764 = vrot.slane %v369, 2
        %v1765 = vrot.slane %v370, 2
        %v1766 = vsel %vm1758, %v1764, %v1765
        %v1767 = vrot.slane %v371, 2
        %v1768 = vsel %vm1758, %v1765, %v1767
        %v1769 = vrot.slane %v372, 2
        %v1770 = vrot.slane %v373, 2
        %v1771 = vsel %vm1758, %v1769, %v1770
        %v1772 = vrot.slane %v374, 2
        %v1773 = vsel %vm1758, %v1770, %v1772
        %v1774 = vrot.slane %v375, 2
        %v1775 = vrot.slane %v376, 2
        %v1776 = vsel %vm1758, %v1774, %v1775
        %v1777 = vrot.slane %v377, 2
        %v1778 = vsel %vm1758, %v1775, %v1777
        %v1787 = vcombine.low %v1761, %v1771
        %v1788 = vcombine.high %v1761, %v1771
        %v1790 = vunpack.c.l.s4 1983009808
        %v1791 = vunpack.c.0.s8 %v1790
        %v1792 = vlaneseq
        %v1793 = vshrl.u32 %v1792, 7
        %v1794 = vsub.s32 %v1791, %v1793
        %v1795 = vrot.slane %v1787, %v1794
        %v1797 = vunpack.c.l.s4 1983009808
        %v1798 = vunpack.c.0.s8 %v1797
        %v1799 = vlaneseq
        %v1800 = vshrl.u32 %v1799, 7
        %v1801 = vsub.s32 %v1798, %v1800
        %v1802 = vrot.slane %v1788, %v1801
        %v1803 = vcombine.low %v1766, %v1776
        %v1804 = vcombine.high %v1766, %v1776
        %v1806 = vunpack.c.l.s4 1983009808
        %v1807 = vunpack.c.0.s8 %v1806
        %v1808 = vlaneseq
        %v1809 = vshrl.u32 %v1808, 7
        %v1810 = vsub.s32 %v1807, %v1809
        %v1811 = vrot.slane %v1803, %v1810
        %v1813 = vunpack.c.l.s4 1983009808
        %v1814 = vunpack.c.0.s8 %v1813
        %v1815 = vlaneseq
        %v1816 = vshrl.u32 %v1815, 7
        %v1817 = vsub.s32 %v1814, %v1816
        %v1818 = vrot.slane %v1804, %v1817
        %v1819 = vcombine.low %v1795, %v1811
        %v1820 = vcombine.high %v1795, %v1811
        %v1822 = vunpack.c.l.s4 1934713408
        %v1823 = vunpack.c.0.s8 %v1822
        %v1824 = vlaneseq
        %v1825 = vshrl.u32 %v1824, 7
        %v1826 = vsub.s32 %v1823, %v1825
        %v1827 = vrot.slane %v1819, %v1826
        %v1829 = vunpack.c.l.s4 1934713408
        %v1830 = vunpack.c.0.s8 %v1829
        %v1831 = vlaneseq
        %v1832 = vshrl.u32 %v1831, 7
        %v1833 = vsub.s32 %v1830, %v1832
        %v1834 = vrot.slane %v1820, %v1833
        %v1835 = vcombine.low %v1802, %v1818
        %v1836 = vcombine.high %v1802, %v1818
        %v1838 = vunpack.c.l.s4 1934713408
        %v1839 = vunpack.c.0.s8 %v1838
        %v1840 = vlaneseq
        %v1841 = vshrl.u32 %v1840, 7
        %v1842 = vsub.s32 %v1839, %v1841
        %v1843 = vrot.slane %v1835, %v1842
        %v1845 = vunpack.c.l.s4 1934713408
        %v1846 = vunpack.c.0.s8 %v1845
        %v1847 = vlaneseq
        %v1848 = vshrl.u32 %v1847, 7
        %v1849 = vsub.s32 %v1846, %v1848
        %v1850 = vrot.slane %v1836, %v1849
        %v1851 = vcombine.high %v1827, 0.0
        %v1852 = vcombine.high %v1834, 0.0
        %v1853 = vcombine.high %v1843, 0.0
        %v1854 = vcombine.high %v1850, 0.0
        %v1855 = vcombine.low %v1763, %v1773
        %v1856 = vcombine.high %v1763, %v1773
        %v1858 = vunpack.c.l.s4 1983009808
        %v1859 = vunpack.c.0.s8 %v1858
        %v1860 = vlaneseq
        %v1861 = vshrl.u32 %v1860, 7
        %v1862 = vsub.s32 %v1859, %v1861
        %v1863 = vrot.slane %v1855, %v1862
        %v1865 = vunpack.c.l.s4 1983009808
        %v1866 = vunpack.c.0.s8 %v1865
        %v1867 = vlaneseq
        %v1868 = vshrl.u32 %v1867, 7
        %v1869 = vsub.s32 %v1866, %v1868
        %v1870 = vrot.slane %v1856, %v1869
        %v1871 = vcombine.low %v1768, %v1778
        %v1872 = vcombine.high %v1768, %v1778
        %v1874 = vunpack.c.l.s4 1983009808
        %v1875 = vunpack.c.0.s8 %v1874
        %v1876 = vlaneseq
        %v1877 = vshrl.u32 %v1876, 7
        %v1878 = vsub.s32 %v1875, %v1877
        %v1879 = vrot.slane %v1871, %v1878
        %v1881 = vunpack.c.l.s4 1983009808
        %v1882 = vunpack.c.0.s8 %v1881
        %v1883 = vlaneseq
        %v1884 = vshrl.u32 %v1883, 7
        %v1885 = vsub.s32 %v1882, %v1884
        %v1886 = vrot.slane %v1872, %v1885
        %v1887 = vcombine.low %v1863, %v1879
        %v1888 = vcombine.high %v1863, %v1879
        %v1890 = vunpack.c.l.s4 1934713408
        %v1891 = vunpack.c.0.s8 %v1890
        %v1892 = vlaneseq
        %v1893 = vshrl.u32 %v1892, 7
        %v1894 = vsub.s32 %v1891, %v1893
        %v1895 = vrot.slane %v1887, %v1894
        %v1897 = vunpack.c.l.s4 1934713408
        %v1898 = vunpack.c.0.s8 %v1897
        %v1899 = vlaneseq
        %v1900 = vshrl.u32 %v1899, 7
        %v1901 = vsub.s32 %v1898, %v1900
        %v1902 = vrot.slane %v1888, %v1901
        %v1903 = vcombine.low %v1870, %v1886
        %v1904 = vcombine.high %v1870, %v1886
        %v1906 = vunpack.c.l.s4 1934713408
        %v1907 = vunpack.c.0.s8 %v1906
        %v1908 = vlaneseq
        %v1909 = vshrl.u32 %v1908, 7
        %v1910 = vsub.s32 %v1907, %v1909
        %v1911 = vrot.slane %v1903, %v1910
        %v1913 = vunpack.c.l.s4 1934713408
        %v1914 = vunpack.c.0.s8 %v1913
        %v1915 = vlaneseq
        %v1916 = vshrl.u32 %v1915, 7
        %v1917 = vsub.s32 %v1914, %v1916
        %v1918 = vrot.slane %v1904, %v1917
        %v1919 = vcombine.high %v1895, 0.0
        %v1920 = vcombine.high %v1902, 0.0
        %v1921 = vcombine.high %v1911, 0.0
        %v1922 = vcombine.high %v1918, 0.0
        %1924 = vrot.lane.b32.xlu0 %v1851, 16
        %v1925 = vpop.permute.xlu0 %1924
        %1928 = vrot.lane.b32.xlu0 %v1834, 32
        %v1929 = vpop.permute.xlu0 %1928
        %1932 = vrot.lane.b32.xlu0 %v1852, 48
        %v1933 = vpop.permute.xlu0 %1932
        %1936 = vrot.lane.b32.xlu0 %v1843, 64
        %v1937 = vpop.permute.xlu0 %1936
        %1940 = vrot.lane.b32.xlu0 %v1853, 80
        %v1941 = vpop.permute.xlu0 %1940
        %1944 = vrot.lane.b32.xlu0 %v1850, 96
        %v1945 = vpop.permute.xlu0 %1944
        %1948 = vrot.lane.b32.xlu0 %v1854, 112
        %v1949 = vpop.permute.xlu0 %1948
        %1952 = vrot.lane.b32.xlu0 %v1919, 16
        %v1953 = vpop.permute.xlu0 %1952
        %1956 = vrot.lane.b32.xlu0 %v1902, 32
        %v1957 = vpop.permute.xlu0 %1956
        %1960 = vrot.lane.b32.xlu0 %v1920, 48
        %v1961 = vpop.permute.xlu0 %1960
        %1964 = vrot.lane.b32.xlu0 %v1911, 64
        %v1965 = vpop.permute.xlu0 %1964
        %1968 = vrot.lane.b32.xlu0 %v1921, 80
        %v1969 = vpop.permute.xlu0 %1968
        %1972 = vrot.lane.b32.xlu0 %v1918, 96
        %v1973 = vpop.permute.xlu0 %1972
        %1976 = vrot.lane.b32.xlu0 %v1922, 112
        %v1977 = vpop.permute.xlu0 %1976
        %v1979 = vsel %vm570, %v1827, %v1925
        %v1980 = vsel %vm572, %v1979, %v1929
        %v1981 = vsel %vm574, %v1980, %v1933
        %v1982 = vsel %vm576, %v1981, %v1937
        %v1983 = vsel %vm578, %v1982, %v1941
        %v1984 = vsel %vm580, %v1983, %v1945
        %v1985 = vsel %vm582, %v1984, %v1949
        %v1986 = vsel %vm570, %v1895, %v1953
        %v1987 = vsel %vm572, %v1986, %v1957
        %v1988 = vsel %vm574, %v1987, %v1961
        %v1989 = vsel %vm576, %v1988, %v1965
        %v1990 = vsel %vm578, %v1989, %v1969
        %v1991 = vsel %vm580, %v1990, %v1973
        %v1992 = vsel %vm582, %v1991, %v1977
        %1993 = vrot.lane.b32.xlu0 %v1761, 127
        %v1994 = vpop.permute.xlu0 %1993
        %1995 = vrot.lane.b32.xlu0 %v1763, 127
        %v1996 = vpop.permute.xlu0 %1995
        %1997 = vrot.lane.b32.xlu0 %v1766, 127
        %v1998 = vpop.permute.xlu0 %1997
        %1999 = vrot.lane.b32.xlu0 %v1768, 127
        %v2000 = vpop.permute.xlu0 %1999
        %2001 = vrot.lane.b32.xlu0 %v1771, 127
        %v2002 = vpop.permute.xlu0 %2001
        %2003 = vrot.lane.b32.xlu0 %v1773, 127
        %v2004 = vpop.permute.xlu0 %2003
        %2005 = vrot.lane.b32.xlu0 %v1776, 127
        %v2006 = vpop.permute.xlu0 %2005
        %2007 = vrot.lane.b32.xlu0 %v1778, 127
        %v2008 = vpop.permute.xlu0 %2007
        %v2017 = vcombine.low %v1994, %v2002
        %v2018 = vcombine.high %v1994, %v2002
        %v2020 = vunpack.c.l.s4 1983009808
        %v2021 = vunpack.c.0.s8 %v2020
        %v2022 = vlaneseq
        %v2023 = vshrl.u32 %v2022, 7
        %v2024 = vsub.s32 %v2021, %v2023
        %v2025 = vrot.slane %v2017, %v2024
        %v2027 = vunpack.c.l.s4 1983009808
        %v2028 = vunpack.c.0.s8 %v2027
        %v2029 = vlaneseq
        %v2030 = vshrl.u32 %v2029, 7
        %v2031 = vsub.s32 %v2028, %v2030
        %v2032 = vrot.slane %v2018, %v2031
        %v2033 = vcombine.low %v1998, %v2006
        %v2034 = vcombine.high %v1998, %v2006
        %v2036 = vunpack.c.l.s4 1983009808
        %v2037 = vunpack.c.0.s8 %v2036
        %v2038 = vlaneseq
        %v2039 = vshrl.u32 %v2038, 7
        %v2040 = vsub.s32 %v2037, %v2039
        %v2041 = vrot.slane %v2033, %v2040
        %v2043 = vunpack.c.l.s4 1983009808
        %v2044 = vunpack.c.0.s8 %v2043
        %v2045 = vlaneseq
        %v2046 = vshrl.u32 %v2045, 7
        %v2047 = vsub.s32 %v2044, %v2046
        %v2048 = vrot.slane %v2034, %v2047
        %v2049 = vcombine.low %v2025, %v2041
        %v2050 = vcombine.high %v2025, %v2041
        %v2052 = vunpack.c.l.s4 1934713408
        %v2053 = vunpack.c.0.s8 %v2052
        %v2054 = vlaneseq
        %v2055 = vshrl.u32 %v2054, 7
        %v2056 = vsub.s32 %v2053, %v2055
        %v2057 = vrot.slane %v2049, %v2056
        %v2059 = vunpack.c.l.s4 1934713408
        %v2060 = vunpack.c.0.s8 %v2059
        %v2061 = vlaneseq
        %v2062 = vshrl.u32 %v2061, 7
        %v2063 = vsub.s32 %v2060, %v2062
        %v2064 = vrot.slane %v2050, %v2063
        %v2065 = vcombine.low %v2032, %v2048
        %v2066 = vcombine.high %v2032, %v2048
        %v2068 = vunpack.c.l.s4 1934713408
        %v2069 = vunpack.c.0.s8 %v2068
        %v2070 = vlaneseq
        %v2071 = vshrl.u32 %v2070, 7
        %v2072 = vsub.s32 %v2069, %v2071
        %v2073 = vrot.slane %v2065, %v2072
        %v2075 = vunpack.c.l.s4 1934713408
        %v2076 = vunpack.c.0.s8 %v2075
        %v2077 = vlaneseq
        %v2078 = vshrl.u32 %v2077, 7
        %v2079 = vsub.s32 %v2076, %v2078
        %v2080 = vrot.slane %v2066, %v2079
        %v2081 = vcombine.high %v2057, 0.0
        %v2082 = vcombine.high %v2064, 0.0
        %v2083 = vcombine.high %v2073, 0.0
        %v2084 = vcombine.high %v2080, 0.0
        %v2085 = vcombine.low %v1996, %v2004
        %v2086 = vcombine.high %v1996, %v2004
        %v2088 = vunpack.c.l.s4 1983009808
        %v2089 = vunpack.c.0.s8 %v2088
        %v2090 = vlaneseq
        %v2091 = vshrl.u32 %v2090, 7
        %v2092 = vsub.s32 %v2089, %v2091
        %v2093 = vrot.slane %v2085, %v2092
        %v2095 = vunpack.c.l.s4 1983009808
        %v2096 = vunpack.c.0.s8 %v2095
        %v2097 = vlaneseq
        %v2098 = vshrl.u32 %v2097, 7
        %v2099 = vsub.s32 %v2096, %v2098
        %v2100 = vrot.slane %v2086, %v2099
        %v2101 = vcombine.low %v2000, %v2008
        %v2102 = vcombine.high %v2000, %v2008
        %v2104 = vunpack.c.l.s4 1983009808
        %v2105 = vunpack.c.0.s8 %v2104
        %v2106 = vlaneseq
        %v2107 = vshrl.u32 %v2106, 7
        %v2108 = vsub.s32 %v2105, %v2107
        %v2109 = vrot.slane %v2101, %v2108
        %v2111 = vunpack.c.l.s4 1983009808
        %v2112 = vunpack.c.0.s8 %v2111
        %v2113 = vlaneseq
        %v2114 = vshrl.u32 %v2113, 7
        %v2115 = vsub.s32 %v2112, %v2114
        %v2116 = vrot.slane %v2102, %v2115
        %v2117 = vcombine.low %v2093, %v2109
        %v2118 = vcombine.high %v2093, %v2109
        %v2120 = vunpack.c.l.s4 1934713408
        %v2121 = vunpack.c.0.s8 %v2120
        %v2122 = vlaneseq
        %v2123 = vshrl.u32 %v2122, 7
        %v2124 = vsub.s32 %v2121, %v2123
        %v2125 = vrot.slane %v2117, %v2124
        %v2127 = vunpack.c.l.s4 1934713408
        %v2128 = vunpack.c.0.s8 %v2127
        %v2129 = vlaneseq
        %v2130 = vshrl.u32 %v2129, 7
        %v2131 = vsub.s32 %v2128, %v2130
        %v2132 = vrot.slane %v2118, %v2131
        %v2133 = vcombine.low %v2100, %v2116
        %v2134 = vcombine.high %v2100, %v2116
        %v2136 = vunpack.c.l.s4 1934713408
        %v2137 = vunpack.c.0.s8 %v2136
        %v2138 = vlaneseq
        %v2139 = vshrl.u32 %v2138, 7
        %v2140 = vsub.s32 %v2137, %v2139
        %v2141 = vrot.slane %v2133, %v2140
        %v2143 = vunpack.c.l.s4 1934713408
        %v2144 = vunpack.c.0.s8 %v2143
        %v2145 = vlaneseq
        %v2146 = vshrl.u32 %v2145, 7
        %v2147 = vsub.s32 %v2144, %v2146
        %v2148 = vrot.slane %v2134, %v2147
        %v2149 = vcombine.high %v2125, 0.0
        %v2150 = vcombine.high %v2132, 0.0
        %v2151 = vcombine.high %v2141, 0.0
        %v2152 = vcombine.high %v2148, 0.0
        %2154 = vrot.lane.b32.xlu0 %v2081, 16
        %v2155 = vpop.permute.xlu0 %2154
        %2158 = vrot.lane.b32.xlu0 %v2064, 32
        %v2159 = vpop.permute.xlu0 %2158
        %2162 = vrot.lane.b32.xlu0 %v2082, 48
        %v2163 = vpop.permute.xlu0 %2162
        %2166 = vrot.lane.b32.xlu0 %v2073, 64
        %v2167 = vpop.permute.xlu0 %2166
        %2170 = vrot.lane.b32.xlu0 %v2083, 80
        %v2171 = vpop.permute.xlu0 %2170
        %2174 = vrot.lane.b32.xlu0 %v2080, 96
        %v2175 = vpop.permute.xlu0 %2174
        %2178 = vrot.lane.b32.xlu0 %v2084, 112
        %v2179 = vpop.permute.xlu0 %2178
        %2182 = vrot.lane.b32.xlu0 %v2149, 16
        %v2183 = vpop.permute.xlu0 %2182
        %2186 = vrot.lane.b32.xlu0 %v2132, 32
        %v2187 = vpop.permute.xlu0 %2186
        %2190 = vrot.lane.b32.xlu0 %v2150, 48
        %v2191 = vpop.permute.xlu0 %2190
        %2194 = vrot.lane.b32.xlu0 %v2141, 64
        %v2195 = vpop.permute.xlu0 %2194
        %2198 = vrot.lane.b32.xlu0 %v2151, 80
        %v2199 = vpop.permute.xlu0 %2198
        %2202 = vrot.lane.b32.xlu0 %v2148, 96
        %v2203 = vpop.permute.xlu0 %2202
        %2206 = vrot.lane.b32.xlu0 %v2152, 112
        %v2207 = vpop.permute.xlu0 %2206
        %v2209 = vsel %vm570, %v2057, %v2155
        %v2210 = vsel %vm572, %v2209, %v2159
        %v2211 = vsel %vm574, %v2210, %v2163
        %v2212 = vsel %vm576, %v2211, %v2167
        %v2213 = vsel %vm578, %v2212, %v2171
        %v2214 = vsel %vm580, %v2213, %v2175
        %v2215 = vsel %vm582, %v2214, %v2179
        %v2216 = vsel %vm570, %v2125, %v2183
        %v2217 = vsel %vm572, %v2216, %v2187
        %v2218 = vsel %vm574, %v2217, %v2191
        %v2219 = vsel %vm576, %v2218, %v2195
        %v2220 = vsel %vm578, %v2219, %v2199
        %v2221 = vsel %vm580, %v2220, %v2203
        %v2222 = vsel %vm582, %v2221, %v2207
        %2223 = vrot.lane.b32.xlu0 %v1761, 126
        %v2224 = vpop.permute.xlu0 %2223
        %2225 = vrot.lane.b32.xlu0 %v1763, 126
        %v2226 = vpop.permute.xlu0 %2225
        %2227 = vrot.lane.b32.xlu0 %v1766, 126
        %v2228 = vpop.permute.xlu0 %2227
        %2229 = vrot.lane.b32.xlu0 %v1768, 126
        %v2230 = vpop.permute.xlu0 %2229
        %2231 = vrot.lane.b32.xlu0 %v1771, 126
        %v2232 = vpop.permute.xlu0 %2231
        %2233 = vrot.lane.b32.xlu0 %v1773, 126
        %v2234 = vpop.permute.xlu0 %2233
        %2235 = vrot.lane.b32.xlu0 %v1776, 126
        %v2236 = vpop.permute.xlu0 %2235
        %2237 = vrot.lane.b32.xlu0 %v1778, 126
        %v2238 = vpop.permute.xlu0 %2237
        %v2247 = vcombine.low %v2224, %v2232
        %v2248 = vcombine.high %v2224, %v2232
        %v2250 = vunpack.c.l.s4 1983009808
        %v2251 = vunpack.c.0.s8 %v2250
        %v2252 = vlaneseq
        %v2253 = vshrl.u32 %v2252, 7
        %v2254 = vsub.s32 %v2251, %v2253
        %v2255 = vrot.slane %v2247, %v2254
        %v2257 = vunpack.c.l.s4 1983009808
        %v2258 = vunpack.c.0.s8 %v2257
        %v2259 = vlaneseq
        %v2260 = vshrl.u32 %v2259, 7
        %v2261 = vsub.s32 %v2258, %v2260
        %v2262 = vrot.slane %v2248, %v2261
        %v2263 = vcombine.low %v2228, %v2236
        %v2264 = vcombine.high %v2228, %v2236
        %v2266 = vunpack.c.l.s4 1983009808
        %v2267 = vunpack.c.0.s8 %v2266
        %v2268 = vlaneseq
        %v2269 = vshrl.u32 %v2268, 7
        %v2270 = vsub.s32 %v2267, %v2269
        %v2271 = vrot.slane %v2263, %v2270
        %v2273 = vunpack.c.l.s4 1983009808
        %v2274 = vunpack.c.0.s8 %v2273
        %v2275 = vlaneseq
        %v2276 = vshrl.u32 %v2275, 7
        %v2277 = vsub.s32 %v2274, %v2276
        %v2278 = vrot.slane %v2264, %v2277
        %v2279 = vcombine.low %v2255, %v2271
        %v2280 = vcombine.high %v2255, %v2271
        %v2282 = vunpack.c.l.s4 1934713408
        %v2283 = vunpack.c.0.s8 %v2282
        %v2284 = vlaneseq
        %v2285 = vshrl.u32 %v2284, 7
        %v2286 = vsub.s32 %v2283, %v2285
        %v2287 = vrot.slane %v2279, %v2286
        %v2289 = vunpack.c.l.s4 1934713408
        %v2290 = vunpack.c.0.s8 %v2289
        %v2291 = vlaneseq
        %v2292 = vshrl.u32 %v2291, 7
        %v2293 = vsub.s32 %v2290, %v2292
        %v2294 = vrot.slane %v2280, %v2293
        %v2295 = vcombine.low %v2262, %v2278
        %v2296 = vcombine.high %v2262, %v2278
        %v2298 = vunpack.c.l.s4 1934713408
        %v2299 = vunpack.c.0.s8 %v2298
        %v2300 = vlaneseq
        %v2301 = vshrl.u32 %v2300, 7
        %v2302 = vsub.s32 %v2299, %v2301
        %v2303 = vrot.slane %v2295, %v2302
        %v2305 = vunpack.c.l.s4 1934713408
        %v2306 = vunpack.c.0.s8 %v2305
        %v2307 = vlaneseq
        %v2308 = vshrl.u32 %v2307, 7
        %v2309 = vsub.s32 %v2306, %v2308
        %v2310 = vrot.slane %v2296, %v2309
        %v2311 = vcombine.high %v2287, 0.0
        %v2312 = vcombine.high %v2294, 0.0
        %v2313 = vcombine.high %v2303, 0.0
        %v2314 = vcombine.high %v2310, 0.0
        %v2315 = vcombine.low %v2226, %v2234
        %v2316 = vcombine.high %v2226, %v2234
        %v2318 = vunpack.c.l.s4 1983009808
        %v2319 = vunpack.c.0.s8 %v2318
        %v2320 = vlaneseq
        %v2321 = vshrl.u32 %v2320, 7
        %v2322 = vsub.s32 %v2319, %v2321
        %v2323 = vrot.slane %v2315, %v2322
        %v2325 = vunpack.c.l.s4 1983009808
        %v2326 = vunpack.c.0.s8 %v2325
        %v2327 = vlaneseq
        %v2328 = vshrl.u32 %v2327, 7
        %v2329 = vsub.s32 %v2326, %v2328
        %v2330 = vrot.slane %v2316, %v2329
        %v2331 = vcombine.low %v2230, %v2238
        %v2332 = vcombine.high %v2230, %v2238
        %v2334 = vunpack.c.l.s4 1983009808
        %v2335 = vunpack.c.0.s8 %v2334
        %v2336 = vlaneseq
        %v2337 = vshrl.u32 %v2336, 7
        %v2338 = vsub.s32 %v2335, %v2337
        %v2339 = vrot.slane %v2331, %v2338
        %v2341 = vunpack.c.l.s4 1983009808
        %v2342 = vunpack.c.0.s8 %v2341
        %v2343 = vlaneseq
        %v2344 = vshrl.u32 %v2343, 7
        %v2345 = vsub.s32 %v2342, %v2344
        %v2346 = vrot.slane %v2332, %v2345
        %v2347 = vcombine.low %v2323, %v2339
        %v2348 = vcombine.high %v2323, %v2339
        %v2350 = vunpack.c.l.s4 1934713408
        %v2351 = vunpack.c.0.s8 %v2350
        %v2352 = vlaneseq
        %v2353 = vshrl.u32 %v2352, 7
        %v2354 = vsub.s32 %v2351, %v2353
        %v2355 = vrot.slane %v2347, %v2354
        %v2357 = vunpack.c.l.s4 1934713408
        %v2358 = vunpack.c.0.s8 %v2357
        %v2359 = vlaneseq
        %v2360 = vshrl.u32 %v2359, 7
        %v2361 = vsub.s32 %v2358, %v2360
        %v2362 = vrot.slane %v2348, %v2361
        %v2363 = vcombine.low %v2330, %v2346
        %v2364 = vcombine.high %v2330, %v2346
        %v2366 = vunpack.c.l.s4 1934713408
        %v2367 = vunpack.c.0.s8 %v2366
        %v2368 = vlaneseq
        %v2369 = vshrl.u32 %v2368, 7
        %v2370 = vsub.s32 %v2367, %v2369
        %v2371 = vrot.slane %v2363, %v2370
        %v2373 = vunpack.c.l.s4 1934713408
        %v2374 = vunpack.c.0.s8 %v2373
        %v2375 = vlaneseq
        %v2376 = vshrl.u32 %v2375, 7
        %v2377 = vsub.s32 %v2374, %v2376
        %v2378 = vrot.slane %v2364, %v2377
        %v2379 = vcombine.high %v2355, 0.0
        %v2380 = vcombine.high %v2362, 0.0
        %v2381 = vcombine.high %v2371, 0.0
        %v2382 = vcombine.high %v2378, 0.0
        %2384 = vrot.lane.b32.xlu0 %v2311, 16
        %v2385 = vpop.permute.xlu0 %2384
        %2388 = vrot.lane.b32.xlu0 %v2294, 32
        %v2389 = vpop.permute.xlu0 %2388
        %2392 = vrot.lane.b32.xlu0 %v2312, 48
        %v2393 = vpop.permute.xlu0 %2392
        %2396 = vrot.lane.b32.xlu0 %v2303, 64
        %v2397 = vpop.permute.xlu0 %2396
        %2400 = vrot.lane.b32.xlu0 %v2313, 80
        %v2401 = vpop.permute.xlu0 %2400
        %2404 = vrot.lane.b32.xlu0 %v2310, 96
        %v2405 = vpop.permute.xlu0 %2404
        %2408 = vrot.lane.b32.xlu0 %v2314, 112
        %v2409 = vpop.permute.xlu0 %2408
        %2412 = vrot.lane.b32.xlu0 %v2379, 16
        %v2413 = vpop.permute.xlu0 %2412
        %2416 = vrot.lane.b32.xlu0 %v2362, 32
        %v2417 = vpop.permute.xlu0 %2416
        %2420 = vrot.lane.b32.xlu0 %v2380, 48
        %v2421 = vpop.permute.xlu0 %2420
        %2424 = vrot.lane.b32.xlu0 %v2371, 64
        %v2425 = vpop.permute.xlu0 %2424
        %2428 = vrot.lane.b32.xlu0 %v2381, 80
        %v2429 = vpop.permute.xlu0 %2428
        %2432 = vrot.lane.b32.xlu0 %v2378, 96
        %v2433 = vpop.permute.xlu0 %2432
        %2436 = vrot.lane.b32.xlu0 %v2382, 112
        %v2437 = vpop.permute.xlu0 %2436
        %v2439 = vsel %vm570, %v2287, %v2385
        %v2440 = vsel %vm572, %v2439, %v2389
        %v2441 = vsel %vm574, %v2440, %v2393
        %v2442 = vsel %vm576, %v2441, %v2397
        %v2443 = vsel %vm578, %v2442, %v2401
        %v2444 = vsel %vm580, %v2443, %v2405
        %v2445 = vsel %vm582, %v2444, %v2409
        %v2446 = vsel %vm570, %v2355, %v2413
        %v2447 = vsel %vm572, %v2446, %v2417
        %v2448 = vsel %vm574, %v2447, %v2421
        %v2449 = vsel %vm576, %v2448, %v2425
        %v2450 = vsel %vm578, %v2449, %v2429
        %v2451 = vsel %vm580, %v2450, %v2433
        %v2452 = vsel %vm582, %v2451, %v2437
        %v2455 = vrot.slane %v821, 4
        %v2456 = vrot.slane %v828, 4
        %v2461 = vrot.slane %v1290, 4
        %v2462 = vrot.slane %v1297, 4
        %v2467 = vrot.slane %v1750, 4
        %v2468 = vrot.slane %v1757, 4
        %v2473 = vrot.slane %v2215, 4
        %v2474 = vrot.slane %v2222, 4
        %vm2477 = vcmask 1043456
        %v2478 = vsel %vm2477, %v583, %v2455
        %v2479 = vsel %vm2477, %v590, %v2456
        %v2480 = vsel %vm2477, %v1051, %v2461
        %v2481 = vsel %vm2477, %v1058, %v2462
        %v2482 = vsel %vm2477, %v1520, %v2467
        %v2483 = vsel %vm2477, %v1527, %v2468
        %v2484 = vsel %vm2477, %v1985, %v2473
        %v2485 = vsel %vm2477, %v1992, %v2474
        %v2486 = vsel %vm2477, %v2445, 1.0
        %v2487 = vsel %vm2477, %v2452, 1.0
        %v2488 = vld [vmem:[#allocation5] sm:$0xf]
        %vm2489 = vcmask 302080
        %v2491 = vsel %vm2489, %v2488, 0
        %vm2493 = vcmask 1044480
        %v2495 = vsel %vm2493, %v2486, 0
        %v2498 = vsel %vm2493, %v2487, 0
        %2500 = vmatprep.subr.mxu0 0.0
        %2501 = vmatpush1.msra.mxu0 0.0
        %2502 = vmatprep.subr.mxu0 0.0
        %2503 = vmatpush1.msra.mxu0 0.0
        %2504 = vmatprep.subr.mxu0 0.0
        %2505 = vmatpush1.msra.mxu0 0.0
        %2506 = vmatprep.subr.mxu0 0.0
        %2507 = vmatpush1.msra.mxu0 0.0
        %2508 = vmatprep.subr.mxu0 0.0
        %2509 = vmatpush1.msra.mxu0 0.0
        %2510 = vmatprep.subr.mxu0 0.0
        %2511 = vmatpush1.msra.mxu0 0.0
        %2512 = vmatprep.subr.mxu0 0.0
        %2513 = vmatpush1.msra.mxu0 0.0
        %2514 = vmatprep.subr.mxu0 0.0
        %2515 = vmatpush1.msra.mxu0 0.0
        %2516 = vmatprep.subr.mxu0 0.0
        %2517 = vmatpush1.msra.mxu0 0.0
        %2518 = vmatprep.subr.mxu0 0.0
        %2519 = vmatpush1.msra.mxu0 0.0
        %2520 = vmatprep.subr.mxu0 0.0
        %2521 = vmatpush1.msra.mxu0 0.0
        %2522 = vmatprep.subr.mxu0 %v2498
        %2523 = vmatpush1.msra.mxu0 %v2495
        %2524 = vmatprep.subr.mxu0 %v2485
        %2525 = vmatpush1.msra.mxu0 %v2484
        %2526 = vmatprep.subr.mxu0 %v2483
        %2527 = vmatpush1.msra.mxu0 %v2482
        %2528 = vmatprep.subr.mxu0 %v2481
        %2529 = vmatpush1.msra.mxu0 %v2480
        %2530 = vmatprep.subr.mxu0 %v2479
        %2531 = vmatpush1.msra.mxu0 %v2478
        %2532 = vmatprep.subr.mxu0 0.0
        %2533 = vmatpush2.msra.mxu0 0.0
        %2534 = vmatprep.subr.mxu0 0.0
        %2535 = vmatpush2.msra.mxu0 0.0
        %2536 = vmatprep.subr.mxu0 0.0
        %2537 = vmatpush2.msra.mxu0 0.0
        %2538 = vmatprep.subr.mxu0 0.0
        %2539 = vmatpush2.msra.mxu0 0.0
        %2540 = vmatprep.subr.mxu0 0.0
        %2541 = vmatpush2.msra.mxu0 0.0
        %2542 = vmatprep.subr.mxu0 0.0
        %2543 = vmatpush2.msra.mxu0 0.0
        %2544 = vmatprep.subr.mxu0 0.0
        %2545 = vmatpush2.msra.mxu0 0.0
        %2546 = vmatprep.subr.mxu0 0.0
        %2547 = vmatpush2.msra.mxu0 0.0
        %2548 = vmatprep.subr.mxu0 0.0
        %2549 = vmatpush2.msra.mxu0 0.0
        %2550 = vmatprep.subr.mxu0 0.0
        %2551 = vmatpush2.msra.mxu0 0.0
        %2552 = vmatprep.subr.mxu0 0.0
        %2553 = vmatpush2.msra.mxu0 0.0
        %2554 = vmatprep.subr.mxu0 0.0
        %2555 = vmatpush2.msra.mxu0 0.0
        %2556 = vmatprep.subr.mxu0 0.0
        %2557 = vmatpush2.msra.mxu0 0.0
        %2558 = vmatprep.subr.mxu0 0.0
        %2559 = vmatpush2.msra.mxu0 0.0
        %2560 = vmatprep.subr.mxu0 0.0
        %2561 = vmatpush2.msra.mxu0 0.0
        %2562 = vmatprep.subr.mxu0 0.0
        %2563 = vmatpush2.msra.mxu0 0.0
        %2564 = vmatprep.mubr.f32.mxu0 0.0
        %2565 = vmatmul.mubr.f32.gmra.mxu0 %v2491
        %v2566 = vpop.f32.mrf.mxu0
        %v2567 = vadd.f32 0.0, %v2566
        %v2568 = vpop.f32.mrf.mxu0
        %v2569 = vadd.f32 0.0, %v2568
        %2570 = vdwg.mxu0
        %v2573 = vcombine.low %v2567, %v2569
        %2575 = vst [vmem:[%s174] sm:$0xff] %v2573
        %s2576 = sand.u32 %s75, 1
        %s2577 = scalar_lea.sflag [#allocation4], %s2576
        %s2578 = sand.u32 %s75, 1
        %s2579 = smul.addr %s2578, 8
        %s2580 = scalar_lea.vmem [#allocation7], %s2579
        // Predicated region
        $region37: #{tpu_custom_call.1} parent=27 // pred_check
          %p2581 = pneg %p85
        $region38: #{tpu_custom_call.1} parent=27 // pred_check_branch
          %2583 = sbr.rel (%p2581) target = $region40
        $region39: #{tpu_custom_call.1} parent=27 // pred_region
          %s2585 = ssub.s32 128, 128
          %2586 = vsyncadd %s2577, %s2585
          %s2587 = smul.addr %s20, 2
          %s2588 = smul.addr %s2587, 64
          %s2589 = scalar_lea.hbm %s2, %s2588
          %s2591 = sshll.u32 %s2580, 4
          %s2592 = int_to_ptr.vmem [resolvable:$true] %s2591
          %2594 = dma.vmem_to_hbm [thread:$0]  %s2592, 128, %s2589, %s2577
        $region40: #{tpu_custom_call.1} parent=27 // pred_fallthru
          _
      $region28: #{tpu_custom_call.1} parent=5 // pred_fallthru
        _
      %p2595 = scmp.le.s32.totalorder 2, %s15
      // Predicated region
      $region41: #{tpu_custom_call.1} parent=5 // pred_check
        %p2596 = pneg %p2595
      $region42: #{tpu_custom_call.1} parent=5 // pred_check_branch
        %2598 = sbr.rel (%p2596) target = $region44
      $region43: #{tpu_custom_call.1} parent=5 // pred_region
        %s2599 = ssub.s32 %s15, 2
        // Predicated region
        $region45: #{tpu_custom_call.1} parent=43 // pred_check
          %p2600 = pneg %p91
        $region46: #{tpu_custom_call.1} parent=43 // pred_check_branch
          %2602 = sbr.rel (%p2600) target = $region48
        $region47: #{tpu_custom_call.1} parent=43 // pred_region
          %s2603 = sand.u32 %s76, 1
          %s2604 = scalar_lea.sflag [#allocation4], %s2603
          %s2605 = sand.u32 %s76, 1
          %s2606 = smul.addr %s2605, 8
          %s2607 = scalar_lea.vmem [#allocation7], %s2606
          %2608 = dma.done %s2604, 128
        $region48: #{tpu_custom_call.1} parent=43 // pred_fallthru
          _
      $region44: #{tpu_custom_call.1} parent=5 // pred_fallthru
        _
    $region6: #{tpu_custom_call.1} parent=1 // loop_footer
      %s19 = sadd.s32 1, %s15
    $region7: #{tpu_custom_call.1} parent=1 // loop_footer_branch
      %14 = sbr.rel target = $region3
    $region8: #{tpu_custom_call.1} parent=1 // loop_exit
      _
    %2609 = vsyncpa [#allocation3], 1
    %s2610 = scalar_lea.sflag [#allocation3], 1
    %2611 = vsyncpa %s2610, 1
    %2612 = vsyncpa [#allocation6], 1
    %2613 = vsyncpa [#allocation4], 1
    %s2614 = scalar_lea.sflag [#allocation4], 1
    %2615 = vsyncpa %s2614, 1

</llo_original>
